<compile_context>
chip_gen: v6e
topology: v6e:2x2x1
jax: 0.10.0
libtpu: 0.0.40
codegen_flags: <defaults>
</compile_context>

<pallas_src>
import jax
import jax.numpy as jnp
import numpy as np
from jax.experimental import pallas as pl
from jax.experimental.pallas import tpu as pltpu

NEG_SLOPE = 0.2        # GATConv default negative_slope
MASK_VALUE = -1e30


def gat_kernel(xT_ref, wT_ref, attT_ref, adjbT_ref, bias_ref, o_ref):
    # xT_ref:   (F, GN)      node features, transposed, matmul dtype
    # wT_ref:   (H*F, F)     W^T, matmul dtype
    # attT_ref: (2H, H*F)    block-diagonal [att_src ; att_dst]^T, matmul dtype
    # adjbT_ref:(GN, GN)     additive mask, transposed: adjbT[j, i] = 0 iff edge j->i
    #                        (or j == i), else -1e30; f32
    # bias_ref: (F, 1)       f32
    # o_ref:    (F, GN)      transposed output
    mm_dtype = xT_ref.dtype
    gn = xT_ref.shape[1]
    nheads = attT_ref.shape[0] // 2
    fo = wT_ref.shape[0] // nheads

    # Linear transform, transposed: (H*F, F) @ (F, GN) -> (H*F, GN), f32 acc.
    hT = jnp.dot(wT_ref[...], xT_ref[...], preferred_element_type=jnp.float32)
    h_mm = hT.astype(mm_dtype)                       # no-op when matmul dtype is f32

    # Fused per-node attention logits for all heads: one (8,128)-result matmul.
    a_cat = jnp.dot(attT_ref[...], h_mm, preferred_element_type=jnp.float32)  # (2H, GN)
    a_cat_t = a_cat.T                                # (GN, 2H) — single-tile XLU transpose

    adj_bias = adjbT_ref[...]                        # (GN, GN), f32
    heads_f = jnp.float32(nheads)

    out_acc = jnp.zeros((fo, gn), jnp.float32)
    for hd in range(nheads):                         # static unrolled loop, H is small
        # e[j, i] = a_src[j] + a_dst[i]  (j = source node on sublanes, i = target on lanes)
        e = a_cat_t[:, hd:hd + 1] + a_cat[nheads + hd:nheads + hd + 1, :]     # (GN, GN)
        e = jnp.maximum(e, NEG_SLOPE * e)                                     # leaky_relu
        e = e + adj_bias                                                      # additive mask
        m = jnp.max(e, axis=0, keepdims=True)        # (1, GN), finite: self loops on the diagonal
        p = jnp.exp(e - m)                           # masked entries underflow to exactly 0
        denom = jnp.sum(p, axis=0, keepdims=True)    # (1, GN)
        # Unnormalized value matmul (LHS is a (Fo, GN) sublane slice of h^T -> 4 pushes);
        # softmax normalization and the 1/H head mean folded into one EUP reciprocal per node.
        o_hT = jnp.dot(h_mm[hd * fo:(hd + 1) * fo, :], p.astype(mm_dtype),
                       preferred_element_type=jnp.float32)                    # (Fo, GN)
        out_acc = out_acc + o_hT * pl.reciprocal(denom * heads_f, approx=True)

    o_ref[...] = (out_acc + bias_ref[...]).astype(o_ref.dtype)


def build_dense_adj(edge_index, n):
    # adj[i, j] = 1 if edge j -> i (PyG: edge_index[0]=src, edge_index[1]=dst), + self loops.
    src = edge_index[0]
    dst = edge_index[1]
    adj = jnp.zeros((n, n), jnp.float32)
    adj = adj.at[dst, src].set(1.0)
    adj = adj.at[jnp.arange(n), jnp.arange(n)].set(1.0)
    return adj


def block_diag_attention(att):
    # (H, F) -> (H*F, H) with A[h*F + f, h] = att[h, f].
    nheads, f = att.shape
    eye = jnp.eye(nheads, dtype=att.dtype)
    return (att[:, :, None] * eye[:, None, :]).reshape(nheads * f, nheads)


def choose_graphs_per_block(num_graphs, n, max_rows=128):
    """Pick graphs-per-step G (and padded batch size) for the transposed layout.

    GN = G*n is the LANE extent of every block, so it must be a multiple of 128
    (or a single block must cover the whole batch).  The binding budget is the
    256 KiB vreg file (identical on v5e/v6e/v7x): each per-head (GN, GN) f32
    e/p tile is GN^2*4 bytes, so GN=128 (16 vregs) keeps everything resident
    while GN>=256 would force Mosaic spills to VMEM.  Prefer >=2 grid steps so
    both v7x TensorCores get work (free on single-TC v5e/v6e).
    """
    best = None
    for g in range(1, num_graphs + 1):
        rows = g * n
        if rows > max_rows:
            break
        if rows % 128 != 0:
            continue
        steps = -(-num_graphs // g)                  # ceil-div: pad batch if needed
        pad = steps * g - num_graphs
        key = (steps >= 2, -pad, rows)
        if best is None or key > best[0]:
            best = (key, g)
    if best is not None:
        g = best[1]
        steps = -(-num_graphs // g)
        return g, steps * g
    # Fallback: one block covering the whole batch (allowed: block == full dims).
    return num_graphs, num_graphs


def gat_layer_forward(x, edge_index, W, att_src, att_dst, bias, *,
                      matmul_dtype=jnp.bfloat16):
    # matmul_dtype=bfloat16 (default) feeds the MXU its native operand width on
    # v5e/v6e/v7x; f32 accumulation is kept via preferred_element_type.  Pass
    # matmul_dtype=jnp.float32 for bit-closer parity with the f32 reference.
    b, s, n, f = x.shape
    B = b * s
    H = att_src.shape[0]

    G, B_pad = choose_graphs_per_block(B, n)
    GN = G * n
    num_steps = B_pad // G

    xf = x.reshape(B * n, f).astype(jnp.float32)
    if B_pad != B:
        pad_rows = (B_pad - B) * n
        xf = jnp.concatenate([xf, jnp.zeros((pad_rows, f), jnp.float32)], axis=0)
    xT = xf.T.astype(matmul_dtype)                                   # (F, B_pad*n)

    adj = build_dense_adj(edge_index, n)
    # Block-diagonal batched graph == exactly what Batch.from_data_list builds.
    block_adj = jnp.kron(jnp.eye(G, dtype=jnp.float32), adj)          # (GN, GN), [i, j]
    adj_bias_t = jnp.where(block_adj > 0, 0.0, MASK_VALUE).T.astype(jnp.float32)  # [j, i]

    # Fused block-diagonal attention operand: (H*F, 2H) -> transpose -> (2H, H*F).
    att_cat = jnp.concatenate(
        [block_diag_attention(att_src.astype(jnp.float32)),
         block_diag_attention(att_dst.astype(jnp.float32))], axis=1)
    attT = att_cat.T.astype(matmul_dtype)                             # (2H, H*F)

    wT = W.T.astype(matmul_dtype)                                     # (H*F, F)
    bias_col = bias.reshape(f, 1).astype(jnp.float32)

    outT = pl.pallas_call(
        gat_kernel,
        out_shape=jax.ShapeDtypeStruct((f, B_pad * n), jnp.float32),
        grid_spec=pltpu.PrefetchScalarGridSpec(
            num_scalar_prefetch=0,
            grid=(num_steps,),
            in_specs=[
                pl.BlockSpec((f, GN), lambda i: (0, i)),       # x^T, G graphs / step
                pl.BlockSpec((H * f, f), lambda i: (0, 0)),    # W^T
                pl.BlockSpec((2 * H, H * f), lambda i: (0, 0)),  # [att_src; att_dst]^T
                pl.BlockSpec((GN, GN), lambda i: (0, 0)),      # transposed additive adjacency mask
                pl.BlockSpec((f, 1), lambda i: (0, 0)),        # bias column
            ],
            out_specs=pl.BlockSpec((f, GN), lambda i: (0, i)),
        ),
        compiler_params=pltpu.CompilerParams(
            dimension_semantics=("parallel",)),
    )(xT, wT, attT, adj_bias_t, bias_col)

    out = outT.T[:B * n]                                              # drop padded graphs
    return out.reshape(b, s, n, f)


def gat_reference(x, edge_index, W, att_src, att_dst, bias):
    # Pure-JAX f32 reference of the same math (for correctness check).
    b, s, n, f = x.shape
    H = att_src.shape[0]
    xf = x.reshape(b * s, n, f).astype(jnp.float32)
    adj = build_dense_adj(edge_index, n)
    h = jnp.einsum('bnf,fk->bnk', xf, W).reshape(b * s, n, H, f)
    a_src = jnp.einsum('bnhf,hf->bnh', h, att_src)
    a_dst = jnp.einsum('bnhf,hf->bnh', h, att_dst)
    e = a_dst[:, :, None, :] + a_src[:, None, :, :]        # (B, i, j, H)
    e = jnp.where(e > 0, e, NEG_SLOPE * e)
    mask = (adj > 0)[None, :, :, None]
    e = jnp.where(mask, e, MASK_VALUE)
    alpha = jax.nn.softmax(e, axis=2)
    alpha = jnp.where(mask, alpha, 0.0)
    out = jnp.einsum('bijh,bjhf->bihf', alpha, h)
    out = out.mean(axis=2) + bias[None, None, :]
    return out.reshape(b, s, n, f)


if __name__ == "__main__":
    # Small shapes consistent with GATLayer(d_model=32, n_heads=4, concat=False).
    b, s, n, d_model, n_heads = 2, 8, 16, 32, 4

    key = jax.random.PRNGKey(0)
    kx, kw, ka1, ka2 = jax.random.split(key, 4)

    x = jax.random.normal(kx, (b, s, n, d_model), jnp.float32)

    fan = d_model
    W = jax.random.normal(kw, (d_model, n_heads * d_model), jnp.float32) * (1.0 / np.sqrt(fan))
    att_src = jax.random.normal(ka1, (n_heads, d_model), jnp.float32) * (1.0 / np.sqrt(fan))
    att_dst = jax.random.normal(ka2, (n_heads, d_model), jnp.float32) * (1.0 / np.sqrt(fan))
    bias = jnp.zeros((d_model,), jnp.float32)

    # Bidirectional ring graph on n nodes: edge_index shape (2, 2n).
    idx = np.arange(n)
    src = np.concatenate([idx, (idx + 1) % n])
    dst = np.concatenate([(idx + 1) % n, idx])
    edge_index = jnp.asarray(np.stack([src, dst]), jnp.int32)

    ref = gat_reference(x, edge_index, W, att_src, att_dst, bias)

    # Tight check with f32 MXU operands (error source: approx EUP reciprocal).
    out_f32 = gat_layer_forward(x, edge_index, W, att_src, att_dst, bias,
                                matmul_dtype=jnp.float32)
    out_f32 = jax.block_until_ready(out_f32)
    np.testing.assert_allclose(np.asarray(out_f32), np.asarray(ref), rtol=5e-3, atol=5e-3)

    # Default path: bf16 MXU operands, f32 accumulation (looser tolerance).
    out_bf16 = gat_layer_forward(x, edge_index, W, att_src, att_dst, bias)
    out_bf16 = jax.block_until_ready(out_bf16)
    np.testing.assert_allclose(np.asarray(out_bf16), np.asarray(ref), rtol=3e-2, atol=3e-2)

    assert out_f32.shape == (b, s, n, d_model)
    assert out_bf16.shape == (b, s, n, d_model)
    print("KERNEL_OK")
</pallas_src>

<mosaic_0001>
module attributes {stable_mosaic.version = 11 : i64} {
  func.func @gat_kernel(%arg0: i32, %arg1: memref<32x128xf32, #tpu.memory_space<vmem>>, %arg2: memref<128x32xf32, #tpu.memory_space<vmem>>, %arg3: memref<8x128xf32, #tpu.memory_space<vmem>>, %arg4: memref<128x128xf32, #tpu.memory_space<vmem>>, %arg5: memref<32x1xf32, #tpu.memory_space<vmem>>, %arg6: memref<32x128xf32, #tpu.memory_space<vmem>>) attributes {dimension_semantics = [#tpu.dimension_semantics<parallel>], iteration_bounds = array<i64: 2>, scalar_prefetch = 0 : i64, scratch_operands = 0 : i64, tpu.core_type = #tpu.core_type<tc>, window_params = [{transform_indices = @transform_0, window_bounds = array<i64: 32, 128>}, {pipeline_mode = #tpu.pipeline_mode<synchronous>, transform_indices = @transform_1, window_bounds = array<i64: 128, 32>}, {pipeline_mode = #tpu.pipeline_mode<synchronous>, transform_indices = @transform_2, window_bounds = array<i64: 8, 128>}, {pipeline_mode = #tpu.pipeline_mode<synchronous>, transform_indices = @transform_3, window_bounds = array<i64: 128, 128>}, {pipeline_mode = #tpu.pipeline_mode<synchronous>, transform_indices = @transform_4, window_bounds = array<i64: 32, 1>}, {transform_indices = @transform_5, window_bounds = array<i64: 32, 128>}]} {
    %c0 = arith.constant 0 : index
    %c0_0 = arith.constant 0 : index
    %0 = vector.load %arg2[%c0, %c0_0] : memref<128x32xf32, #tpu.memory_space<vmem>>, vector<128x32xf32>
    %c0_1 = arith.constant 0 : index
    %c0_2 = arith.constant 0 : index
    %1 = vector.load %arg1[%c0_1, %c0_2] : memref<32x128xf32, #tpu.memory_space<vmem>>, vector<32x128xf32>
    %cst = arith.constant dense<0.000000e+00> : vector<128x128xf32>
    %2 = tpu.matmul %0, %1, %cst {dimension_numbers = #tpu.dot_dimension_numbers<[1], [0], [0], [1], [0, 0, 1, 1], [], []>} : vector<128x32xf32>, vector<32x128xf32>, vector<128x128xf32> -> vector<128x128xf32>
    %c0_3 = arith.constant 0 : index
    %c0_4 = arith.constant 0 : index
    %3 = vector.load %arg3[%c0_3, %c0_4] : memref<8x128xf32, #tpu.memory_space<vmem>>, vector<8x128xf32>
    %cst_5 = arith.constant dense<0.000000e+00> : vector<8x128xf32>
    %4 = tpu.matmul %3, %2, %cst_5 {dimension_numbers = #tpu.dot_dimension_numbers<[1], [0], [0], [1], [0, 0, 1, 1], [], []>} : vector<8x128xf32>, vector<128x128xf32>, vector<8x128xf32> -> vector<8x128xf32>
    %5 = tpu.transpose %4, [1, 0] : vector<8x128xf32> -> vector<128x8xf32>
    %c0_6 = arith.constant 0 : index
    %c0_7 = arith.constant 0 : index
    %6 = vector.load %arg4[%c0_6, %c0_7] : memref<128x128xf32, #tpu.memory_space<vmem>>, vector<128x128xf32>
    %cst_8 = arith.constant 0.000000e+00 : f32
    %7 = vector.broadcast %cst_8 : f32 to vector<32x128xf32>
    %8 = vector.extract_strided_slice %5 {offsets = [0, 0], sizes = [128, 1], strides = [1, 1]} : vector<128x8xf32> to vector<128x1xf32>
    %9 = vector.extract_strided_slice %4 {offsets = [4, 0], sizes = [1, 128], strides = [1, 1]} : vector<8x128xf32> to vector<1x128xf32>
    %10 = vector.broadcast %8 : vector<128x1xf32> to vector<128x128xf32>
    %11 = vector.broadcast %9 : vector<1x128xf32> to vector<128x128xf32>
    %12 = arith.addf %10, %11 : vector<128x128xf32>
    %cst_9 = arith.constant 2.000000e-01 : f32
    %13 = vector.broadcast %cst_9 : f32 to vector<128x128xf32>
    %14 = arith.mulf %13, %12 : vector<128x128xf32>
    %15 = arith.maximumf %12, %14 : vector<128x128xf32>
    %16 = arith.addf %15, %6 : vector<128x128xf32>
    %cst_10 = arith.constant dense<0xFF800000> : vector<128xf32>
    %17 = vector.multi_reduction <maximumf>, %16, %cst_10 [0] : vector<128x128xf32> to vector<128xf32>
    %18 = vector.shape_cast %17 : vector<128xf32> to vector<1x128xf32>
    %19 = vector.broadcast %18 : vector<1x128xf32> to vector<128x128xf32>
    %20 = arith.subf %16, %19 : vector<128x128xf32>
    %21 = math.exp %20 : vector<128x128xf32>
    %cst_11 = arith.constant dense<0.000000e+00> : vector<128xf32>
    %22 = vector.multi_reduction <add>, %21, %cst_11 [0] : vector<128x128xf32> to vector<128xf32>
    %23 = vector.shape_cast %22 : vector<128xf32> to vector<1x128xf32>
    %24 = vector.extract_strided_slice %2 {offsets = [0, 0], sizes = [32, 128], strides = [1, 1]} : vector<128x128xf32> to vector<32x128xf32>
    %cst_12 = arith.constant dense<0.000000e+00> : vector<32x128xf32>
    %25 = tpu.matmul %24, %21, %cst_12 {dimension_numbers = #tpu.dot_dimension_numbers<[1], [0], [0], [1], [0, 0, 1, 1], [], []>} : vector<32x128xf32>, vector<128x128xf32>, vector<32x128xf32> -> vector<32x128xf32>
    %cst_13 = arith.constant 4.000000e+00 : f32
    %26 = vector.broadcast %cst_13 : f32 to vector<1x128xf32>
    %27 = arith.mulf %23, %26 : vector<1x128xf32>
    %28 = tpu.reciprocal %27 {approx = true} : vector<1x128xf32> -> vector<1x128xf32>
    %29 = vector.broadcast %28 : vector<1x128xf32> to vector<32x128xf32>
    %30 = arith.mulf %25, %29 : vector<32x128xf32>
    %31 = arith.addf %7, %30 : vector<32x128xf32>
    %32 = vector.extract_strided_slice %5 {offsets = [0, 1], sizes = [128, 1], strides = [1, 1]} : vector<128x8xf32> to vector<128x1xf32>
    %33 = vector.extract_strided_slice %4 {offsets = [5, 0], sizes = [1, 128], strides = [1, 1]} : vector<8x128xf32> to vector<1x128xf32>
    %34 = vector.broadcast %32 : vector<128x1xf32> to vector<128x128xf32>
    %35 = vector.broadcast %33 : vector<1x128xf32> to vector<128x128xf32>
    %36 = arith.addf %34, %35 : vector<128x128xf32>
    %cst_14 = arith.constant 2.000000e-01 : f32
    %37 = vector.broadcast %cst_14 : f32 to vector<128x128xf32>
    %38 = arith.mulf %37, %36 : vector<128x128xf32>
    %39 = arith.maximumf %36, %38 : vector<128x128xf32>
    %40 = arith.addf %39, %6 : vector<128x128xf32>
    %cst_15 = arith.constant dense<0xFF800000> : vector<128xf32>
    %41 = vector.multi_reduction <maximumf>, %40, %cst_15 [0] : vector<128x128xf32> to vector<128xf32>
    %42 = vector.shape_cast %41 : vector<128xf32> to vector<1x128xf32>
    %43 = vector.broadcast %42 : vector<1x128xf32> to vector<128x128xf32>
    %44 = arith.subf %40, %43 : vector<128x128xf32>
    %45 = math.exp %44 : vector<128x128xf32>
    %cst_16 = arith.constant dense<0.000000e+00> : vector<128xf32>
    %46 = vector.multi_reduction <add>, %45, %cst_16 [0] : vector<128x128xf32> to vector<128xf32>
    %47 = vector.shape_cast %46 : vector<128xf32> to vector<1x128xf32>
    %48 = vector.extract_strided_slice %2 {offsets = [32, 0], sizes = [32, 128], strides = [1, 1]} : vector<128x128xf32> to vector<32x128xf32>
    %cst_17 = arith.constant dense<0.000000e+00> : vector<32x128xf32>
    %49 = tpu.matmul %48, %45, %cst_17 {dimension_numbers = #tpu.dot_dimension_numbers<[1], [0], [0], [1], [0, 0, 1, 1], [], []>} : vector<32x128xf32>, vector<128x128xf32>, vector<32x128xf32> -> vector<32x128xf32>
    %cst_18 = arith.constant 4.000000e+00 : f32
    %50 = vector.broadcast %cst_18 : f32 to vector<1x128xf32>
    %51 = arith.mulf %47, %50 : vector<1x128xf32>
    %52 = tpu.reciprocal %51 {approx = true} : vector<1x128xf32> -> vector<1x128xf32>
    %53 = vector.broadcast %52 : vector<1x128xf32> to vector<32x128xf32>
    %54 = arith.mulf %49, %53 : vector<32x128xf32>
    %55 = arith.addf %31, %54 : vector<32x128xf32>
    %56 = vector.extract_strided_slice %5 {offsets = [0, 2], sizes = [128, 1], strides = [1, 1]} : vector<128x8xf32> to vector<128x1xf32>
    %57 = vector.extract_strided_slice %4 {offsets = [6, 0], sizes = [1, 128], strides = [1, 1]} : vector<8x128xf32> to vector<1x128xf32>
    %58 = vector.broadcast %56 : vector<128x1xf32> to vector<128x128xf32>
    %59 = vector.broadcast %57 : vector<1x128xf32> to vector<128x128xf32>
    %60 = arith.addf %58, %59 : vector<128x128xf32>
    %cst_19 = arith.constant 2.000000e-01 : f32
    %61 = vector.broadcast %cst_19 : f32 to vector<128x128xf32>
    %62 = arith.mulf %61, %60 : vector<128x128xf32>
    %63 = arith.maximumf %60, %62 : vector<128x128xf32>
    %64 = arith.addf %63, %6 : vector<128x128xf32>
    %cst_20 = arith.constant dense<0xFF800000> : vector<128xf32>
    %65 = vector.multi_reduction <maximumf>, %64, %cst_20 [0] : vector<128x128xf32> to vector<128xf32>
    %66 = vector.shape_cast %65 : vector<128xf32> to vector<1x128xf32>
    %67 = vector.broadcast %66 : vector<1x128xf32> to vector<128x128xf32>
    %68 = arith.subf %64, %67 : vector<128x128xf32>
    %69 = math.exp %68 : vector<128x128xf32>
    %cst_21 = arith.constant dense<0.000000e+00> : vector<128xf32>
    %70 = vector.multi_reduction <add>, %69, %cst_21 [0] : vector<128x128xf32> to vector<128xf32>
    %71 = vector.shape_cast %70 : vector<128xf32> to vector<1x128xf32>
    %72 = vector.extract_strided_slice %2 {offsets = [64, 0], sizes = [32, 128], strides = [1, 1]} : vector<128x128xf32> to vector<32x128xf32>
    %cst_22 = arith.constant dense<0.000000e+00> : vector<32x128xf32>
    %73 = tpu.matmul %72, %69, %cst_22 {dimension_numbers = #tpu.dot_dimension_numbers<[1], [0], [0], [1], [0, 0, 1, 1], [], []>} : vector<32x128xf32>, vector<128x128xf32>, vector<32x128xf32> -> vector<32x128xf32>
    %cst_23 = arith.constant 4.000000e+00 : f32
    %74 = vector.broadcast %cst_23 : f32 to vector<1x128xf32>
    %75 = arith.mulf %71, %74 : vector<1x128xf32>
    %76 = tpu.reciprocal %75 {approx = true} : vector<1x128xf32> -> vector<1x128xf32>
    %77 = vector.broadcast %76 : vector<1x128xf32> to vector<32x128xf32>
    %78 = arith.mulf %73, %77 : vector<32x128xf32>
    %79 = arith.addf %55, %78 : vector<32x128xf32>
    %80 = vector.extract_strided_slice %5 {offsets = [0, 3], sizes = [128, 1], strides = [1, 1]} : vector<128x8xf32> to vector<128x1xf32>
    %81 = vector.extract_strided_slice %4 {offsets = [7, 0], sizes = [1, 128], strides = [1, 1]} : vector<8x128xf32> to vector<1x128xf32>
    %82 = vector.broadcast %80 : vector<128x1xf32> to vector<128x128xf32>
    %83 = vector.broadcast %81 : vector<1x128xf32> to vector<128x128xf32>
    %84 = arith.addf %82, %83 : vector<128x128xf32>
    %cst_24 = arith.constant 2.000000e-01 : f32
    %85 = vector.broadcast %cst_24 : f32 to vector<128x128xf32>
    %86 = arith.mulf %85, %84 : vector<128x128xf32>
    %87 = arith.maximumf %84, %86 : vector<128x128xf32>
    %88 = arith.addf %87, %6 : vector<128x128xf32>
    %cst_25 = arith.constant dense<0xFF800000> : vector<128xf32>
    %89 = vector.multi_reduction <maximumf>, %88, %cst_25 [0] : vector<128x128xf32> to vector<128xf32>
    %90 = vector.shape_cast %89 : vector<128xf32> to vector<1x128xf32>
    %91 = vector.broadcast %90 : vector<1x128xf32> to vector<128x128xf32>
    %92 = arith.subf %88, %91 : vector<128x128xf32>
    %93 = math.exp %92 : vector<128x128xf32>
    %cst_26 = arith.constant dense<0.000000e+00> : vector<128xf32>
    %94 = vector.multi_reduction <add>, %93, %cst_26 [0] : vector<128x128xf32> to vector<128xf32>
    %95 = vector.shape_cast %94 : vector<128xf32> to vector<1x128xf32>
    %96 = vector.extract_strided_slice %2 {offsets = [96, 0], sizes = [32, 128], strides = [1, 1]} : vector<128x128xf32> to vector<32x128xf32>
    %cst_27 = arith.constant dense<0.000000e+00> : vector<32x128xf32>
    %97 = tpu.matmul %96, %93, %cst_27 {dimension_numbers = #tpu.dot_dimension_numbers<[1], [0], [0], [1], [0, 0, 1, 1], [], []>} : vector<32x128xf32>, vector<128x128xf32>, vector<32x128xf32> -> vector<32x128xf32>
    %cst_28 = arith.constant 4.000000e+00 : f32
    %98 = vector.broadcast %cst_28 : f32 to vector<1x128xf32>
    %99 = arith.mulf %95, %98 : vector<1x128xf32>
    %100 = tpu.reciprocal %99 {approx = true} : vector<1x128xf32> -> vector<1x128xf32>
    %101 = vector.broadcast %100 : vector<1x128xf32> to vector<32x128xf32>
    %102 = arith.mulf %97, %101 : vector<32x128xf32>
    %103 = arith.addf %79, %102 : vector<32x128xf32>
    %c0_29 = arith.constant 0 : index
    %c0_30 = arith.constant 0 : index
    %104 = vector.load %arg5[%c0_29, %c0_30] : memref<32x1xf32, #tpu.memory_space<vmem>>, vector<32x1xf32>
    %105 = vector.broadcast %104 : vector<32x1xf32> to vector<32x128xf32>
    %106 = arith.addf %103, %105 : vector<32x128xf32>
    %c0_31 = arith.constant 0 : index
    %c0_32 = arith.constant 0 : index
    %107 = vector.load %arg6[%c0_31, %c0_32] : memref<32x128xf32, #tpu.memory_space<vmem>>, vector<32x128xf32>
    tpu.vector_store %arg6[%c0_31, %c0_32], %106 {strides = array<i32>} : memref<32x128xf32, #tpu.memory_space<vmem>>, vector<32x128xf32>,
    return
  }
  func.func @transform_0(%arg0: i32) -> (i32, i32) {
    %c0_i32 = arith.constant 0 : i32
    %c0_i32_0 = arith.constant 0 : i32
    return %c0_i32, %arg0 : i32, i32
  }
  func.func @transform_1(%arg0: i32) -> (i32, i32) {
    %c0_i32 = arith.constant 0 : i32
    %c0_i32_0 = arith.constant 0 : i32
    %c0_i32_1 = arith.constant 0 : i32
    return %c0_i32, %c0_i32_0 : i32, i32
  }
  func.func @transform_2(%arg0: i32) -> (i32, i32) {
    %c0_i32 = arith.constant 0 : i32
    %c0_i32_0 = arith.constant 0 : i32
    %c0_i32_1 = arith.constant 0 : i32
    return %c0_i32, %c0_i32_0 : i32, i32
  }
  func.func @transform_3(%arg0: i32) -> (i32, i32) {
    %c0_i32 = arith.constant 0 : i32
    %c0_i32_0 = arith.constant 0 : i32
    %c0_i32_1 = arith.constant 0 : i32
    return %c0_i32, %c0_i32_0 : i32, i32
  }
  func.func @transform_4(%arg0: i32) -> (i32, i32) {
    %c0_i32 = arith.constant 0 : i32
    %c0_i32_0 = arith.constant 0 : i32
    %c0_i32_1 = arith.constant 0 : i32
    return %c0_i32, %c0_i32_0 : i32, i32
  }
  func.func @transform_5(%arg0: i32) -> (i32, i32) {
    %c0_i32 = arith.constant 0 : i32
    %c0_i32_0 = arith.constant 0 : i32
    return %c0_i32, %arg0 : i32, i32
  }
}

</mosaic_0001>

<llo_original>
// kernel: tpu_custom_call.1
$region0: #{tpu_custom_call.1}
  #allocation0 [shape = 'u32[]', space=smem, size = 0x4, offset = 0x4, fixed_abs, tag = 'smem constant byte address 0x4 - core index']
  #allocation1 [shape = 'u32[144,128]{1,0:T(1,128)}', space=vmem, size = 0x12000, scoped, tag = 'internal scratch']
  %s0 = inlined_call_operand.vmem [shape: f32[32,256], index: 0, kind: input, shape index: {}]
  %s1 = inlined_call_operand.vmem [shape: f32[128,32], index: 1, kind: input, shape index: {}]
  %s2 = inlined_call_operand.hbm [shape: f32[8,128], index: 2, kind: input, shape index: {}]
  %s3 = inlined_call_operand.vmem [shape: f32[128,128], index: 3, kind: input, shape index: {}]
  %s4 = inlined_call_operand.vmem [shape: f32[32,1], index: 4, kind: input, shape index: {}]
  %s5 = inlined_call_operand.hbm [shape: f32[32,256], index: 5, kind: output, shape index: {}]
  %s6 = sld [smem:[#allocation0]]
  $region95: #{tpu_custom_call.1} parent=0
    _
  %s8 = ssub.s32 1, %s6
  %s9 = scalar_select 0, %s8, %s6
  $region1: #{tpu_custom_call.1} parent=0
    #allocation2 [shape = 'u8[32768]{0}', space=vmem, size = 0x8000, scoped, tag = 'input window, operand 0']
    #allocation3 [shape = 'u8[4096]{0}', space=vmem, size = 0x1000, scoped, tag = 'input window, operand 2, single buffered']
    #allocation4 [shape = 's32[2]{0}', space=sflag, size = 0x8, scoped, tag = 'scoped memory for tpu_custom_call.1']
    #allocation5 [shape = 's32[2]{0}', space=sflag, size = 0x8, scoped, tag = 'scoped memory for tpu_custom_call.1']
    #allocation6 [shape = 'u8[32768]{0}', space=vmem, size = 0x8000, scoped, tag = 'output window, operand 0']
    %10 = vsyncpa [#allocation4], 0
    %11 = vsyncpa [#allocation5], 0
    %s12 = scalar_lea.sflag [#allocation5], 1
    %13 = vsyncpa %s12, 0
    loop: start=0, step=1, limit=4
    $region2: #{tpu_custom_call.1} parent=1 // loop_pre_header
      _
    $region3: #{tpu_custom_call.1} parent=1 // loop_header
      %s15 = sphi 0, %s19
      %p16 = scmp.ge.s32.totalorder %s15, 4
      %s25 = sphi 0, %s27
      %s28 = sphi 0, %s25
      %s29 = sphi 0, %s28
      %s45 = sphi 0, %s29
      %s49 = sphi 0, %s49
      %s51 = sphi 0, %s49
      %s52 = sphi 0, %s51
      %s66 = sphi 0, %s52
      %s70 = sphi 0, %s70
      %s72 = sphi 0, %s70
      %s73 = sphi 0, %s72
      %s87 = sphi 0, %s73
      %s91 = sphi 0, %s91
      %s93 = sphi 0, %s91
      %s94 = sphi 0, %s93
      %s108 = sphi 0, %s94
      %s112 = sphi 0, %s112
      %s114 = sphi 0, %s112
      %s115 = sphi 0, %s114
      %s129 = sphi 0, %s115
      %s135 = sphi 0, %s137
      %s138 = sphi 0, %s135
      %s139 = sphi 0, %s138
      %s155 = sphi 0, %s139
    $region4: #{tpu_custom_call.1} parent=1 // loop_header_branch
      %18 = sbr.rel (%p16) target = $region8
    $region5: #{tpu_custom_call.1} parent=1 // loop_body
      %s20 = ssub.s32 %s15, 1
      %s21 = ssub.s32 %s15, 2
      %s22 = sadd.s32 %s15, 1
      %s23 = ssub.s32 %s15, %s22
      %p24 = scmp.eq.s32.totalorder %s23, 0
      %s26 = sadd.s32 %s25, 1
      %s27 = scalar_select %p24, %s25, %s26
      %p30 = pneg %p24
      %p31 = scmp.eq.s32.totalorder %s15, 1
      %p32 = por %p30, %p31
      %p33 = scmp.ne.s32.totalorder %s25, %s28
      %p34 = scmp.eq.s32.totalorder %s15, 0
      %p35 = por %p33, %p34
      %p36 = scmp.ne.s32.totalorder %s25, %s28
      %p37 = scmp.eq.s32.totalorder %s20, 1
      %p38 = por %p36, %p37
      %p39 = scmp.ne.s32.totalorder %s28, %s29
      %p40 = scmp.eq.s32.totalorder %s20, 0
      %p41 = por %p39, %p40
      %p42 = scmp.ne.s32.totalorder %s28, %s29
      %p43 = scmp.eq.s32.totalorder %s21, 1
      %p44 = por %p42, %p43
      %p46 = scmp.ne.s32.totalorder %s29, %s45
      %p47 = scmp.eq.s32.totalorder %s21, 0
      %p48 = por %p46, %p47
      %s50 = sadd.s32 %s49, 1
      %p53 = scmp.eq.s32.totalorder %s15, 1
      %p54 = scmp.ne.s32.totalorder %s49, %s51
      %p55 = scmp.eq.s32.totalorder %s15, 0
      %p56 = por %p54, %p55
      %p57 = scmp.ne.s32.totalorder %s49, %s51
      %p58 = scmp.eq.s32.totalorder %s20, 1
      %p59 = por %p57, %p58
      %p60 = scmp.ne.s32.totalorder %s51, %s52
      %p61 = scmp.eq.s32.totalorder %s20, 0
      %p62 = por %p60, %p61
      %p63 = scmp.ne.s32.totalorder %s51, %s52
      %p64 = scmp.eq.s32.totalorder %s21, 1
      %p65 = por %p63, %p64
      %p67 = scmp.ne.s32.totalorder %s52, %s66
      %p68 = scmp.eq.s32.totalorder %s21, 0
      %p69 = por %p67, %p68
      %s71 = sadd.s32 %s70, 1
      %p74 = scmp.eq.s32.totalorder %s15, 1
      %p75 = scmp.ne.s32.totalorder %s70, %s72
      %p76 = scmp.eq.s32.totalorder %s15, 0
      %p77 = por %p75, %p76
      %p78 = scmp.ne.s32.totalorder %s70, %s72
      %p79 = scmp.eq.s32.totalorder %s20, 1
      %p80 = por %p78, %p79
      %p81 = scmp.ne.s32.totalorder %s72, %s73
      %p82 = scmp.eq.s32.totalorder %s20, 0
      %p83 = por %p81, %p82
      %p84 = scmp.ne.s32.totalorder %s72, %s73
      %p85 = scmp.eq.s32.totalorder %s21, 1
      %p86 = por %p84, %p85
      %p88 = scmp.ne.s32.totalorder %s73, %s87
      %p89 = scmp.eq.s32.totalorder %s21, 0
      %p90 = por %p88, %p89
      %s92 = sadd.s32 %s91, 1
      %p95 = scmp.eq.s32.totalorder %s15, 1
      %p96 = scmp.ne.s32.totalorder %s91, %s93
      %p97 = scmp.eq.s32.totalorder %s15, 0
      %p98 = por %p96, %p97
      %p99 = scmp.ne.s32.totalorder %s91, %s93
      %p100 = scmp.eq.s32.totalorder %s20, 1
      %p101 = por %p99, %p100
      %p102 = scmp.ne.s32.totalorder %s93, %s94
      %p103 = scmp.eq.s32.totalorder %s20, 0
      %p104 = por %p102, %p103
      %p105 = scmp.ne.s32.totalorder %s93, %s94
      %p106 = scmp.eq.s32.totalorder %s21, 1
      %p107 = por %p105, %p106
      %p109 = scmp.ne.s32.totalorder %s94, %s108
      %p110 = scmp.eq.s32.totalorder %s21, 0
      %p111 = por %p109, %p110
      %s113 = sadd.s32 %s112, 1
      %p116 = scmp.eq.s32.totalorder %s15, 1
      %p117 = scmp.ne.s32.totalorder %s112, %s114
      %p118 = scmp.eq.s32.totalorder %s15, 0
      %p119 = por %p117, %p118
      %p120 = scmp.ne.s32.totalorder %s112, %s114
      %p121 = scmp.eq.s32.totalorder %s20, 1
      %p122 = por %p120, %p121
      %p123 = scmp.ne.s32.totalorder %s114, %s115
      %p124 = scmp.eq.s32.totalorder %s20, 0
      %p125 = por %p123, %p124
      %p126 = scmp.ne.s32.totalorder %s114, %s115
      %p127 = scmp.eq.s32.totalorder %s21, 1
      %p128 = por %p126, %p127
      %p130 = scmp.ne.s32.totalorder %s115, %s129
      %p131 = scmp.eq.s32.totalorder %s21, 0
      %p132 = por %p130, %p131
      %s133 = ssub.s32 %s15, %s22
      %p134 = scmp.eq.s32.totalorder %s133, 0
      %s136 = sadd.s32 %s135, 1
      %s137 = scalar_select %p134, %s135, %s136
      %p140 = pneg %p134
      %p141 = scmp.eq.s32.totalorder %s15, 1
      %p142 = por %p140, %p141
      %p143 = scmp.ne.s32.totalorder %s135, %s138
      %p144 = scmp.eq.s32.totalorder %s15, 0
      %p145 = por %p143, %p144
      %p146 = scmp.ne.s32.totalorder %s135, %s138
      %p147 = scmp.eq.s32.totalorder %s20, 1
      %p148 = por %p146, %p147
      %p149 = scmp.ne.s32.totalorder %s138, %s139
      %p150 = scmp.eq.s32.totalorder %s20, 0
      %p151 = por %p149, %p150
      %p152 = scmp.ne.s32.totalorder %s138, %s139
      %p153 = scmp.eq.s32.totalorder %s21, 1
      %p154 = por %p152, %p153
      %p156 = scmp.ne.s32.totalorder %s139, %s155
      %p157 = scmp.eq.s32.totalorder %s21, 0
      %p158 = por %p156, %p157
      %p159 = scmp.le.s32.totalorder 1, %s15
      %p160 = scmp.lt.s32.totalorder %s15, 3
      %p161 = pnand %p159, %p160
      %p162 = pneg %p161
      // Predicated region
      $region9: #{tpu_custom_call.1} parent=5 // pred_check
        _
      $region10: #{tpu_custom_call.1} parent=5 // pred_check_branch
        %164 = sbr.rel (%p161) target = $region12
      $region11: #{tpu_custom_call.1} parent=5 // pred_region
        %s165 = ssub.s32 %s15, 1
        // Predicated region
        $region13: #{tpu_custom_call.1} parent=11 // pred_check
          %p166 = pneg %p62
        $region14: #{tpu_custom_call.1} parent=11 // pred_check_branch
          %168 = sbr.rel (%p166) target = $region16
        $region15: #{tpu_custom_call.1} parent=11 // pred_region
          _
        $region16: #{tpu_custom_call.1} parent=11 // pred_fallthru
          _
        // Predicated region
        $region17: #{tpu_custom_call.1} parent=11 // pred_check
          %p169 = pneg %p83
        $region18: #{tpu_custom_call.1} parent=11 // pred_check_branch
          %171 = sbr.rel (%p169) target = $region20
        $region19: #{tpu_custom_call.1} parent=11 // pred_region
          %s173 = ssub.s32 128, 128
          %174 = vsyncadd [#allocation4], %s173
          %s176 = sshll.u32 [#allocation3], 4
          %s177 = int_to_ptr.vmem [resolvable:$true] %s176
          %179 = dma.hbm_to_vmem [thread:$0]  %s2, 128, %s177, [#allocation4]
        $region20: #{tpu_custom_call.1} parent=11 // pred_fallthru
          _
        // Predicated region
        $region21: #{tpu_custom_call.1} parent=11 // pred_check
          %p180 = pneg %p104
        $region22: #{tpu_custom_call.1} parent=11 // pred_check_branch
          %182 = sbr.rel (%p180) target = $region24
        $region23: #{tpu_custom_call.1} parent=11 // pred_region
          _
        $region24: #{tpu_custom_call.1} parent=11 // pred_fallthru
          _
        // Predicated region
        $region25: #{tpu_custom_call.1} parent=11 // pred_check
          %p183 = pneg %p125
        $region26: #{tpu_custom_call.1} parent=11 // pred_check_branch
          %185 = sbr.rel (%p183) target = $region28
        $region27: #{tpu_custom_call.1} parent=11 // pred_region
          _
        $region28: #{tpu_custom_call.1} parent=11 // pred_fallthru
          _
      $region12: #{tpu_custom_call.1} parent=5 // pred_fallthru
        _
      %p186 = scmp.lt.s32.totalorder %s15, 2
      // Predicated region
      $region29: #{tpu_custom_call.1} parent=5 // pred_check
        %p187 = pneg %p186
      $region30: #{tpu_custom_call.1} parent=5 // pred_check_branch
        %189 = sbr.rel (%p187) target = $region32
      $region31: #{tpu_custom_call.1} parent=5 // pred_region
        // Predicated region
        $region33: #{tpu_custom_call.1} parent=31 // pred_check
          %p190 = pneg %p35
        $region34: #{tpu_custom_call.1} parent=31 // pred_check_branch
          %192 = sbr.rel (%p190) target = $region36
        $region35: #{tpu_custom_call.1} parent=31 // pred_region
          %s193 = sand.u32 %s25, 1
          %s194 = sand.u32 %s25, 1
          %s195 = smul.addr %s194, 32
          %s196 = scalar_lea.vmem [#allocation2], %s195
          %s197 = smul.addr %s15, 8
          %s198 = scalar_lea.vmem %s0, %s197
          // Predicated region
          $region37: #{tpu_custom_call.1} parent=35 // pred_check
            _
          $region38: #{tpu_custom_call.1} parent=35 // pred_check_branch
            %200 = sbr.rel (0) target = $region40
          $region39: #{tpu_custom_call.1} parent=35 // pred_region
            // Predicated region
            $region41: #{tpu_custom_call.1} parent=39 // pred_check
              _
            $region42: #{tpu_custom_call.1} parent=39 // pred_check_branch
              %202 = sbr.rel (0) target = $region44
            $region43: #{tpu_custom_call.1} parent=39 // pred_region
              // Predicated region
              $region56: #{tpu_custom_call.1} parent=43 // pred_check
                _
              $region57: #{tpu_custom_call.1} parent=43 // pred_check_branch
                %224 = sbr.rel (0) target = $region59
              $region58: #{tpu_custom_call.1} parent=43 // pred_region
                loop: start=0, step=1, limit=1
                $region60: #{tpu_custom_call.1} parent=58 // loop_pre_header
                  _
                $region61: #{tpu_custom_call.1} parent=58 // loop_header
                  %s226 = sphi 0, %s230
                  %p227 = scmp.ge.s32.totalorder %s226, 1
                  %s231 = sphi %s198, %s198
                  %s232 = sphi %s196, %s196
                $region62: #{tpu_custom_call.1} parent=58 // loop_header_branch
                  %229 = sbr.rel (%p227) target = $region66
                $region63: #{tpu_custom_call.1} parent=58 // loop_body
                  %v233 = vld [vmem:[%s231] sm:$0xff]
                  %234 = vst [vmem:[%s232] sm:$0xff] %v233
                  %v235 = vld [vmem:[%s231 + $0x10] sm:$0xff]
                  %236 = vst [vmem:[%s232 + $0x8] sm:$0xff] %v235
                  %v237 = vld [vmem:[%s231 + $0x20] sm:$0xff]
                  %238 = vst [vmem:[%s232 + $0x10] sm:$0xff] %v237
                  %v239 = vld [vmem:[%s231 + $0x30] sm:$0xff]
                  %240 = vst [vmem:[%s232 + $0x18] sm:$0xff] %v239
                $region64: #{tpu_custom_call.1} parent=58 // loop_footer
                  %s230 = sadd.s32 1, %s226
                $region65: #{tpu_custom_call.1} parent=58 // loop_footer_branch
                  %225 = sbr.rel target = $region61
                $region66: #{tpu_custom_call.1} parent=58 // loop_exit
                  _
              $region59: #{tpu_custom_call.1} parent=43 // pred_fallthru
                _
              // Predicated region
              $region67: #{tpu_custom_call.1} parent=43 // pred_check
                _
              $region68: #{tpu_custom_call.1} parent=43 // pred_check_branch
                %242 = sbr.rel target = $region70
              $region69: #{tpu_custom_call.1} parent=43 // pred_region
                _
              $region70: #{tpu_custom_call.1} parent=43 // pred_fallthru
                _
            $region44: #{tpu_custom_call.1} parent=39 // pred_fallthru
              _
            // Predicated region
            $region45: #{tpu_custom_call.1} parent=39 // pred_check
              _
            $region46: #{tpu_custom_call.1} parent=39 // pred_check_branch
              %204 = sbr.rel target = $region48
            $region47: #{tpu_custom_call.1} parent=39 // pred_region
              %s206 = ssub.s32 256, 1
              loop: start=0, step=1, limit=1
              $region49: #{tpu_custom_call.1} parent=47 // loop_pre_header
                _
              $region50: #{tpu_custom_call.1} parent=47 // loop_header
                %s208 = sphi 0, %s212
                %p209 = scmp.ge.s32.totalorder %s208, 1
                %s213 = sphi %s198, %s198
                %s214 = sphi %s196, %s196
              $region51: #{tpu_custom_call.1} parent=47 // loop_header_branch
                %211 = sbr.rel (%p209) target = $region55
              $region52: #{tpu_custom_call.1} parent=47 // loop_body
                %v215 = vld [vmem:[%s213] sm:%s206]
                %216 = vst [vmem:[%s214] sm:%s206] %v215
                %v217 = vld [vmem:[%s213 + $0x10] sm:%s206]
                %218 = vst [vmem:[%s214 + $0x8] sm:%s206] %v217
                %v219 = vld [vmem:[%s213 + $0x20] sm:%s206]
                %220 = vst [vmem:[%s214 + $0x10] sm:%s206] %v219
                %v221 = vld [vmem:[%s213 + $0x30] sm:%s206]
                %222 = vst [vmem:[%s214 + $0x18] sm:%s206] %v221
              $region53: #{tpu_custom_call.1} parent=47 // loop_footer
                %s212 = sadd.s32 1, %s208
              $region54: #{tpu_custom_call.1} parent=47 // loop_footer_branch
                %207 = sbr.rel target = $region50
              $region55: #{tpu_custom_call.1} parent=47 // loop_exit
                _
            $region48: #{tpu_custom_call.1} parent=39 // pred_fallthru
              _
          $region40: #{tpu_custom_call.1} parent=35 // pred_fallthru
            _
          %243 = vnop
        $region36: #{tpu_custom_call.1} parent=31 // pred_fallthru
          _
      $region32: #{tpu_custom_call.1} parent=5 // pred_fallthru
        _
      %p244 = scmp.le.s32.totalorder 1, %s15
      %p245 = scmp.lt.s32.totalorder %s15, 3
      %p246 = pnand %p244, %p245
      %p247 = pneg %p246
      // Predicated region
      $region71: #{tpu_custom_call.1} parent=5 // pred_check
        _
      $region72: #{tpu_custom_call.1} parent=5 // pred_check_branch
        %249 = sbr.rel (%p246) target = $region74
      $region73: #{tpu_custom_call.1} parent=5 // pred_region
        %s250 = ssub.s32 %s15, 1
        %s251 = sand.u32 %s28, 1
        %s252 = sand.u32 %s28, 1
        %s253 = smul.addr %s252, 32
        %s254 = scalar_lea.vmem [#allocation2], %s253
        // Predicated region
        $region75: #{tpu_custom_call.1} parent=73 // pred_check
          %p255 = pneg %p41
        $region76: #{tpu_custom_call.1} parent=73 // pred_check_branch
          %257 = sbr.rel (%p255) target = $region78
        $region77: #{tpu_custom_call.1} parent=73 // pred_region
          _
        $region78: #{tpu_custom_call.1} parent=73 // pred_fallthru
          _
        // Predicated region
        $region79: #{tpu_custom_call.1} parent=73 // pred_check
          %p258 = pneg %p83
        $region80: #{tpu_custom_call.1} parent=73 // pred_check_branch
          %260 = sbr.rel (%p258) target = $region82
        $region81: #{tpu_custom_call.1} parent=73 // pred_region
          %261 = dma.done [#allocation4], 128
        $region82: #{tpu_custom_call.1} parent=73 // pred_fallthru
          _
        %s262 = sand.u32 %s28, 1
        %s263 = sand.u32 %s28, 1
        %s264 = smul.addr %s263, 32
        %s265 = scalar_lea.vmem [#allocation2], %s264
        %p266 = pneg %p41
        %p267 = pneg %p38
        %p268 = pneg %p62
        %p269 = pneg %p59
        %p270 = pneg %p83
        %p271 = pneg %p80
        %p272 = pneg %p104
        %p273 = pneg %p101
        %p274 = pneg %p125
        %p275 = pneg %p122
        %p276 = pneg %p151
        %p277 = pneg %p148
        %s278 = sand.u32 %s138, 1
        %s279 = scalar_lea.sflag [#allocation5], %s278
        %s280 = sand.u32 %s138, 1
        %s281 = smul.addr %s280, 32
        %s282 = scalar_lea.vmem [#allocation6], %s281
        %v283 = vld [vmem:[%s1] sm:$0xff]
        %v284 = vld [vmem:[%s1 + $0x8] sm:$0xff]
        %v285 = vld [vmem:[%s1 + $0x10] sm:$0xff]
        %v286 = vld [vmem:[%s1 + $0x18] sm:$0xff]
        %v287 = vld [vmem:[%s1 + $0x20] sm:$0xff]
        %v288 = vld [vmem:[%s1 + $0x28] sm:$0xff]
        %v289 = vld [vmem:[%s1 + $0x30] sm:$0xff]
        %v290 = vld [vmem:[%s1 + $0x38] sm:$0xff]
        %v291 = vld [vmem:[%s1 + $0x40] sm:$0xff]
        %v292 = vld [vmem:[%s1 + $0x48] sm:$0xff]
        %v293 = vld [vmem:[%s1 + $0x50] sm:$0xff]
        %v294 = vld [vmem:[%s1 + $0x58] sm:$0xff]
        %v295 = vld [vmem:[%s1 + $0x60] sm:$0xff]
        %v296 = vld [vmem:[%s1 + $0x68] sm:$0xff]
        %v297 = vld [vmem:[%s1 + $0x70] sm:$0xff]
        %v298 = vld [vmem:[%s1 + $0x78] sm:$0xff]
        %v299 = vld [vmem:[%s254] sm:$0xff]
        %v300 = vld [vmem:[%s254 + $0x8] sm:$0xff]
        %v301 = vld [vmem:[%s254 + $0x10] sm:$0xff]
        %v302 = vld [vmem:[%s254 + $0x18] sm:$0xff]
        %vm303 = vcmask 261120
        %v305 = vsel %vm303, %v283, 0
        %v308 = vsel %vm303, %v284, 0
        %v311 = vsel %vm303, %v285, 0
        %v314 = vsel %vm303, %v286, 0
        %v317 = vsel %vm303, %v287, 0
        %v320 = vsel %vm303, %v288, 0
        %v323 = vsel %vm303, %v289, 0
        %v326 = vsel %vm303, %v290, 0
        %v329 = vsel %vm303, %v291, 0
        %v332 = vsel %vm303, %v292, 0
        %v335 = vsel %vm303, %v293, 0
        %v338 = vsel %vm303, %v294, 0
        %v341 = vsel %vm303, %v295, 0
        %v344 = vsel %vm303, %v296, 0
        %v347 = vsel %vm303, %v297, 0
        %v350 = vsel %vm303, %v298, 0
        %352 = vmatprep.subr.mxu0 0.0
        %353 = vmatpush1.msra.mxu0 0.0
        %354 = vmatprep.subr.mxu0 0.0
        %355 = vmatpush1.msra.mxu0 0.0
        %356 = vmatprep.subr.mxu0 0.0
        %357 = vmatpush1.msra.mxu0 0.0
        %358 = vmatprep.subr.mxu0 0.0
        %359 = vmatpush1.msra.mxu0 0.0
        %360 = vmatprep.subr.mxu0 0.0
        %361 = vmatpush1.msra.mxu0 0.0
        %362 = vmatprep.subr.mxu0 0.0
        %363 = vmatpush1.msra.mxu0 0.0
        %364 = vmatprep.subr.mxu0 0.0
        %365 = vmatpush1.msra.mxu0 0.0
        %366 = vmatprep.subr.mxu0 0.0
        %367 = vmatpush1.msra.mxu0 0.0
        %368 = vmatprep.subr.mxu0 0.0
        %369 = vmatpush1.msra.mxu0 0.0
        %370 = vmatprep.subr.mxu0 0.0
        %371 = vmatpush1.msra.mxu0 0.0
        %372 = vmatprep.subr.mxu0 0.0
        %373 = vmatpush1.msra.mxu0 0.0
        %374 = vmatprep.subr.mxu0 0.0
        %375 = vmatpush1.msra.mxu0 0.0
        %376 = vmatprep.subr.mxu0 0.0
        %377 = vmatpush1.msra.mxu0 %v302
        %378 = vmatprep.subr.mxu0 0.0
        %379 = vmatpush1.msra.mxu0 %v301
        %380 = vmatprep.subr.mxu0 0.0
        %381 = vmatpush1.msra.mxu0 %v300
        %382 = vmatprep.subr.mxu0 0.0
        %383 = vmatpush1.msra.mxu0 %v299
        %384 = vmatprep.subr.mxu0 0.0
        %385 = vmatpush2.msra.mxu0 0.0
        %386 = vmatprep.subr.mxu0 0.0
        %387 = vmatpush2.msra.mxu0 0.0
        %388 = vmatprep.subr.mxu0 0.0
        %389 = vmatpush2.msra.mxu0 0.0
        %390 = vmatprep.subr.mxu0 0.0
        %391 = vmatpush2.msra.mxu0 0.0
        %392 = vmatprep.subr.mxu0 0.0
        %393 = vmatpush2.msra.mxu0 0.0
        %394 = vmatprep.subr.mxu0 0.0
        %395 = vmatpush2.msra.mxu0 0.0
        %396 = vmatprep.subr.mxu0 0.0
        %397 = vmatpush2.msra.mxu0 0.0
        %398 = vmatprep.subr.mxu0 0.0
        %399 = vmatpush2.msra.mxu0 0.0
        %400 = vmatprep.subr.mxu0 0.0
        %401 = vmatpush2.msra.mxu0 0.0
        %402 = vmatprep.subr.mxu0 0.0
        %403 = vmatpush2.msra.mxu0 0.0
        %404 = vmatprep.subr.mxu0 0.0
        %405 = vmatpush2.msra.mxu0 0.0
        %406 = vmatprep.subr.mxu0 0.0
        %407 = vmatpush2.msra.mxu0 0.0
        %408 = vmatprep.subr.mxu0 0.0
        %409 = vmatpush2.msra.mxu0 0.0
        %410 = vmatprep.subr.mxu0 0.0
        %411 = vmatpush2.msra.mxu0 0.0
        %412 = vmatprep.subr.mxu0 0.0
        %413 = vmatpush2.msra.mxu0 0.0
        %414 = vmatprep.subr.mxu0 0.0
        %415 = vmatpush2.msra.mxu0 0.0
        %416 = vmatprep.mubr.f32.mxu0 0.0
        %417 = vmatmul.mubr.f32.gmra.mxu0 %v305
        %v418 = vpop.f32.mrf.mxu0
        %v419 = vadd.f32 0.0, %v418
        %v420 = vpop.f32.mrf.mxu0
        %421 = vmatprep.mubr.f32.mxu0 0.0
        %422 = vmatmul.mubr.f32.gmra.mxu0 %v308
        %v423 = vpop.f32.mrf.mxu0
        %v424 = vadd.f32 0.0, %v423
        %v425 = vpop.f32.mrf.mxu0
        %426 = vmatprep.mubr.f32.mxu0 0.0
        %427 = vmatmul.mubr.f32.gmra.mxu0 %v311
        %v428 = vpop.f32.mrf.mxu0
        %v429 = vadd.f32 0.0, %v428
        %v430 = vpop.f32.mrf.mxu0
        %431 = vmatprep.mubr.f32.mxu0 0.0
        %432 = vmatmul.mubr.f32.gmra.mxu0 %v314
        %v433 = vpop.f32.mrf.mxu0
        %v434 = vadd.f32 0.0, %v433
        %v435 = vpop.f32.mrf.mxu0
        %436 = vmatprep.mubr.f32.mxu0 0.0
        %437 = vmatmul.mubr.f32.gmra.mxu0 %v317
        %v438 = vpop.f32.mrf.mxu0
        %v439 = vadd.f32 0.0, %v438
        %v440 = vpop.f32.mrf.mxu0
        %441 = vmatprep.mubr.f32.mxu0 0.0
        %442 = vmatmul.mubr.f32.gmra.mxu0 %v320
        %v443 = vpop.f32.mrf.mxu0
        %v444 = vadd.f32 0.0, %v443
        %v445 = vpop.f32.mrf.mxu0
        %446 = vmatprep.mubr.f32.mxu0 0.0
        %447 = vmatmul.mubr.f32.gmra.mxu0 %v323
        %v448 = vpop.f32.mrf.mxu0
        %v449 = vadd.f32 0.0, %v448
        %v450 = vpop.f32.mrf.mxu0
        %451 = vmatprep.mubr.f32.mxu0 0.0
        %452 = vmatmul.mubr.f32.gmra.mxu0 %v326
        %v453 = vpop.f32.mrf.mxu0
        %v454 = vadd.f32 0.0, %v453
        %v455 = vpop.f32.mrf.mxu0
        %456 = vmatprep.mubr.f32.mxu0 0.0
        %457 = vmatmul.mubr.f32.gmra.mxu0 %v329
        %v458 = vpop.f32.mrf.mxu0
        %v459 = vadd.f32 0.0, %v458
        %v460 = vpop.f32.mrf.mxu0
        %461 = vmatprep.mubr.f32.mxu0 0.0
        %462 = vmatmul.mubr.f32.gmra.mxu0 %v332
        %v463 = vpop.f32.mrf.mxu0
        %v464 = vadd.f32 0.0, %v463
        %v465 = vpop.f32.mrf.mxu0
        %466 = vmatprep.mubr.f32.mxu0 0.0
        %467 = vmatmul.mubr.f32.gmra.mxu0 %v335
        %v468 = vpop.f32.mrf.mxu0
        %v469 = vadd.f32 0.0, %v468
        %v470 = vpop.f32.mrf.mxu0
        %471 = vmatprep.mubr.f32.mxu0 0.0
        %472 = vmatmul.mubr.f32.gmra.mxu0 %v338
        %v473 = vpop.f32.mrf.mxu0
        %v474 = vadd.f32 0.0, %v473
        %v475 = vpop.f32.mrf.mxu0
        %476 = vmatprep.mubr.f32.mxu0 0.0
        %477 = vmatmul.mubr.f32.gmra.mxu0 %v341
        %v478 = vpop.f32.mrf.mxu0
        %v479 = vadd.f32 0.0, %v478
        %v480 = vpop.f32.mrf.mxu0
        %481 = vmatprep.mubr.f32.mxu0 0.0
        %482 = vmatmul.mubr.f32.gmra.mxu0 %v344
        %v483 = vpop.f32.mrf.mxu0
        %v484 = vadd.f32 0.0, %v483
        %v485 = vpop.f32.mrf.mxu0
        %486 = vmatprep.mubr.f32.mxu0 0.0
        %487 = vmatmul.mubr.f32.gmra.mxu0 %v347
        %v488 = vpop.f32.mrf.mxu0
        %v489 = vadd.f32 0.0, %v488
        %v490 = vpop.f32.mrf.mxu0
        %491 = vmatprep.mubr.f32.mxu0 0.0
        %492 = vmatmul.mubr.f32.gmra.mxu0 %v350
        %v493 = vpop.f32.mrf.mxu0
        %v494 = vadd.f32 0.0, %v493
        %v495 = vpop.f32.mrf.mxu0
        %496 = vdwg.mxu0
        %v497 = vld [vmem:[#allocation3] sm:$0xff]
        %498 = vmatprep.subr.mxu0 0.0
        %499 = vmatpush1.msra.mxu0 %v494
        %500 = vmatprep.subr.mxu0 0.0
        %501 = vmatpush1.msra.mxu0 %v489
        %502 = vmatprep.subr.mxu0 0.0
        %503 = vmatpush1.msra.mxu0 %v484
        %504 = vmatprep.subr.mxu0 0.0
        %505 = vmatpush1.msra.mxu0 %v479
        %506 = vmatprep.subr.mxu0 0.0
        %507 = vmatpush1.msra.mxu0 %v474
        %508 = vmatprep.subr.mxu0 0.0
        %509 = vmatpush1.msra.mxu0 %v469
        %510 = vmatprep.subr.mxu0 0.0
        %511 = vmatpush1.msra.mxu0 %v464
        %512 = vmatprep.subr.mxu0 0.0
        %513 = vmatpush1.msra.mxu0 %v459
        %514 = vmatprep.subr.mxu0 0.0
        %515 = vmatpush1.msra.mxu0 %v454
        %516 = vmatprep.subr.mxu0 0.0
        %517 = vmatpush1.msra.mxu0 %v449
        %518 = vmatprep.subr.mxu0 0.0
        %519 = vmatpush1.msra.mxu0 %v444
        %520 = vmatprep.subr.mxu0 0.0
        %521 = vmatpush1.msra.mxu0 %v439
        %522 = vmatprep.subr.mxu0 0.0
        %523 = vmatpush1.msra.mxu0 %v434
        %524 = vmatprep.subr.mxu0 0.0
        %525 = vmatpush1.msra.mxu0 %v429
        %526 = vmatprep.subr.mxu0 0.0
        %527 = vmatpush1.msra.mxu0 %v424
        %528 = vmatprep.subr.mxu0 0.0
        %529 = vmatpush1.msra.mxu0 %v419
        %530 = vmatprep.subr.mxu0 0.0
        %531 = vmatpush2.msra.mxu0 0.0
        %532 = vmatprep.subr.mxu0 0.0
        %533 = vmatpush2.msra.mxu0 0.0
        %534 = vmatprep.subr.mxu0 0.0
        %535 = vmatpush2.msra.mxu0 0.0
        %536 = vmatprep.subr.mxu0 0.0
        %537 = vmatpush2.msra.mxu0 0.0
        %538 = vmatprep.subr.mxu0 0.0
        %539 = vmatpush2.msra.mxu0 0.0
        %540 = vmatprep.subr.mxu0 0.0
        %541 = vmatpush2.msra.mxu0 0.0
        %542 = vmatprep.subr.mxu0 0.0
        %543 = vmatpush2.msra.mxu0 0.0
        %544 = vmatprep.subr.mxu0 0.0
        %545 = vmatpush2.msra.mxu0 0.0
        %546 = vmatprep.subr.mxu0 0.0
        %547 = vmatpush2.msra.mxu0 0.0
        %548 = vmatprep.subr.mxu0 0.0
        %549 = vmatpush2.msra.mxu0 0.0
        %550 = vmatprep.subr.mxu0 0.0
        %551 = vmatpush2.msra.mxu0 0.0
        %552 = vmatprep.subr.mxu0 0.0
        %553 = vmatpush2.msra.mxu0 0.0
        %554 = vmatprep.subr.mxu0 0.0
        %555 = vmatpush2.msra.mxu0 0.0
        %556 = vmatprep.subr.mxu0 0.0
        %557 = vmatpush2.msra.mxu0 0.0
        %558 = vmatprep.subr.mxu0 0.0
        %559 = vmatpush2.msra.mxu0 0.0
        %560 = vmatprep.subr.mxu0 0.0
        %561 = vmatpush2.msra.mxu0 0.0
        %562 = vmatprep.mubr.f32.mxu0 0.0
        %563 = vmatmul.mubr.f32.gmra.mxu0 %v497
        %v564 = vpop.f32.mrf.mxu0
        %v565 = vadd.f32 0.0, %v564
        %v566 = vpop.f32.mrf.mxu0
        %567 = vdwg.mxu0
        %568 = vxpose.xlu0.b32.start [1/16] %v565, 128
        %569 = vxpose.xlu0.b32.cont [2/16] 0.0, 128
        %570 = vxpose.xlu0.b32.cont [3/16] 0.0, 128
        %571 = vxpose.xlu0.b32.cont [4/16] 0.0, 128
        %572 = vxpose.xlu0.b32.cont [5/16] 0.0, 128
        %573 = vxpose.xlu0.b32.cont [6/16] 0.0, 128
        %574 = vxpose.xlu0.b32.cont [7/16] 0.0, 128
        %575 = vxpose.xlu0.b32.cont [8/16] 0.0, 128
        %576 = vxpose.xlu0.b32.cont [9/16] 0.0, 128
        %577 = vxpose.xlu0.b32.cont [10/16] 0.0, 128
        %578 = vxpose.xlu0.b32.cont [11/16] 0.0, 128
        %579 = vxpose.xlu0.b32.cont [12/16] 0.0, 128
        %580 = vxpose.xlu0.b32.cont [13/16] 0.0, 128
        %581 = vxpose.xlu0.b32.cont [14/16] 0.0, 128
        %582 = vxpose.xlu0.b32.cont [15/16] 0.0, 128
        %583 = vxpose.xlu0.b32.end [16/16] 0.0, 128
        %v584 = vpop.trf.xlu0
        %v585 = vpop.trf.xlu0
        %v586 = vpop.trf.xlu0
        %v587 = vpop.trf.xlu0
        %v588 = vpop.trf.xlu0
        %v589 = vpop.trf.xlu0
        %v590 = vpop.trf.xlu0
        %v591 = vpop.trf.xlu0
        %v592 = vpop.trf.xlu0
        %v593 = vpop.trf.xlu0
        %v594 = vpop.trf.xlu0
        %v595 = vpop.trf.xlu0
        %v596 = vpop.trf.xlu0
        %v597 = vpop.trf.xlu0
        %v598 = vpop.trf.xlu0
        %v599 = vpop.trf.xlu0
        %v600 = vld [vmem:[%s3] sm:$0xff]
        %v601 = vld [vmem:[%s3 + $0x8] sm:$0xff]
        %v602 = vld [vmem:[%s3 + $0x10] sm:$0xff]
        %v603 = vld [vmem:[%s3 + $0x18] sm:$0xff]
        %v604 = vld [vmem:[%s3 + $0x20] sm:$0xff]
        %v605 = vld [vmem:[%s3 + $0x28] sm:$0xff]
        %v606 = vld [vmem:[%s3 + $0x30] sm:$0xff]
        %v607 = vld [vmem:[%s3 + $0x38] sm:$0xff]
        %v608 = vld [vmem:[%s3 + $0x40] sm:$0xff]
        %v609 = vld [vmem:[%s3 + $0x48] sm:$0xff]
        %v610 = vld [vmem:[%s3 + $0x50] sm:$0xff]
        %v611 = vld [vmem:[%s3 + $0x58] sm:$0xff]
        %v612 = vld [vmem:[%s3 + $0x60] sm:$0xff]
        %v613 = vld [vmem:[%s3 + $0x68] sm:$0xff]
        %v614 = vld [vmem:[%s3 + $0x70] sm:$0xff]
        %v615 = vld [vmem:[%s3 + $0x78] sm:$0xff]
        %617 = vset.pattern.permute.xlu0 0
        %618 = vperm.xlu0 %617, %v584
        %v619 = vpop.permute.xlu0 %618
        %622 = vset.pattern.permute.xlu0 0
        %623 = vperm.xlu0 %622, %v585
        %v624 = vpop.permute.xlu0 %623
        %627 = vset.pattern.permute.xlu0 0
        %628 = vperm.xlu0 %627, %v586
        %v629 = vpop.permute.xlu0 %628
        %632 = vset.pattern.permute.xlu0 0
        %633 = vperm.xlu0 %632, %v587
        %v634 = vpop.permute.xlu0 %633
        %637 = vset.pattern.permute.xlu0 0
        %638 = vperm.xlu0 %637, %v588
        %v639 = vpop.permute.xlu0 %638
        %642 = vset.pattern.permute.xlu0 0
        %643 = vperm.xlu0 %642, %v589
        %v644 = vpop.permute.xlu0 %643
        %647 = vset.pattern.permute.xlu0 0
        %648 = vperm.xlu0 %647, %v590
        %v649 = vpop.permute.xlu0 %648
        %652 = vset.pattern.permute.xlu0 0
        %653 = vperm.xlu0 %652, %v591
        %v654 = vpop.permute.xlu0 %653
        %657 = vset.pattern.permute.xlu0 0
        %658 = vperm.xlu0 %657, %v592
        %v659 = vpop.permute.xlu0 %658
        %662 = vset.pattern.permute.xlu0 0
        %663 = vperm.xlu0 %662, %v593
        %v664 = vpop.permute.xlu0 %663
        %667 = vset.pattern.permute.xlu0 0
        %668 = vperm.xlu0 %667, %v594
        %v669 = vpop.permute.xlu0 %668
        %672 = vset.pattern.permute.xlu0 0
        %673 = vperm.xlu0 %672, %v595
        %v674 = vpop.permute.xlu0 %673
        %677 = vset.pattern.permute.xlu0 0
        %678 = vperm.xlu0 %677, %v596
        %v679 = vpop.permute.xlu0 %678
        %682 = vset.pattern.permute.xlu0 0
        %683 = vperm.xlu0 %682, %v597
        %v684 = vpop.permute.xlu0 %683
        %687 = vset.pattern.permute.xlu0 0
        %688 = vperm.xlu0 %687, %v598
        %v689 = vpop.permute.xlu0 %688
        %692 = vset.pattern.permute.xlu0 0
        %693 = vperm.xlu0 %692, %v599
        %v694 = vpop.permute.xlu0 %693
        %v696 = vlaneseq
        %v697 = vshrl.u32 %v696, 7
        %v698 = vsub.s32 4, %v697
        %v699 = vrot.slane %v565, %v698
        %v700 = vadd.f32 %v619, %v699
        %v701 = vadd.f32 %v624, %v699
        %v702 = vadd.f32 %v629, %v699
        %v703 = vadd.f32 %v634, %v699
        %v704 = vadd.f32 %v639, %v699
        %v705 = vadd.f32 %v644, %v699
        %v706 = vadd.f32 %v649, %v699
        %v707 = vadd.f32 %v654, %v699
        %v708 = vadd.f32 %v659, %v699
        %v709 = vadd.f32 %v664, %v699
        %v710 = vadd.f32 %v669, %v699
        %v711 = vadd.f32 %v674, %v699
        %v712 = vadd.f32 %v679, %v699
        %v713 = vadd.f32 %v684, %v699
        %v714 = vadd.f32 %v689, %v699
        %v715 = vadd.f32 %v694, %v699
        %v716 = vmul.f32 %v700, 0.2
        %v717 = vmul.f32 %v701, 0.2
        %v718 = vmul.f32 %v702, 0.2
        %v719 = vmul.f32 %v703, 0.2
        %v720 = vmul.f32 %v704, 0.2
        %v721 = vmul.f32 %v705, 0.2
        %v722 = vmul.f32 %v706, 0.2
        %v723 = vmul.f32 %v707, 0.2
        %v724 = vmul.f32 %v708, 0.2
        %v725 = vmul.f32 %v709, 0.2
        %v726 = vmul.f32 %v710, 0.2
        %v727 = vmul.f32 %v711, 0.2
        %v728 = vmul.f32 %v712, 0.2
        %v729 = vmul.f32 %v713, 0.2
        %v730 = vmul.f32 %v714, 0.2
        %v731 = vmul.f32 %v715, 0.2
        %v732 = vmax.f32 %v700, %v716
        %v733 = vmax.f32 %v701, %v717
        %v734 = vmax.f32 %v702, %v718
        %v735 = vmax.f32 %v703, %v719
        %v736 = vmax.f32 %v704, %v720
        %v737 = vmax.f32 %v705, %v721
        %v738 = vmax.f32 %v706, %v722
        %v739 = vmax.f32 %v707, %v723
        %v740 = vmax.f32 %v708, %v724
        %v741 = vmax.f32 %v709, %v725
        %v742 = vmax.f32 %v710, %v726
        %v743 = vmax.f32 %v711, %v727
        %v744 = vmax.f32 %v712, %v728
        %v745 = vmax.f32 %v713, %v729
        %v746 = vmax.f32 %v714, %v730
        %v747 = vmax.f32 %v715, %v731
        %v748 = vadd.f32 %v732, %v600
        %v749 = vadd.f32 %v733, %v601
        %v750 = vadd.f32 %v734, %v602
        %v751 = vadd.f32 %v735, %v603
        %v752 = vadd.f32 %v736, %v604
        %v753 = vadd.f32 %v737, %v605
        %v754 = vadd.f32 %v738, %v606
        %v755 = vadd.f32 %v739, %v607
        %v756 = vadd.f32 %v740, %v608
        %v757 = vadd.f32 %v741, %v609
        %v758 = vadd.f32 %v742, %v610
        %v759 = vadd.f32 %v743, %v611
        %v760 = vadd.f32 %v744, %v612
        %v761 = vadd.f32 %v745, %v613
        %v762 = vadd.f32 %v746, %v614
        %v763 = vadd.f32 %v747, %v615
        %v764 = vmax.f32 %v748, %v752
        %v765 = vmax.f32 %v749, %v753
        %v766 = vmax.f32 %v750, %v754
        %v767 = vmax.f32 %v751, %v755
        %v768 = vmax.f32 %v764, %v756
        %v769 = vmax.f32 %v765, %v757
        %v770 = vmax.f32 %v766, %v758
        %v771 = vmax.f32 %v767, %v759
        %v772 = vmax.f32 %v768, %v760
        %v773 = vmax.f32 %v769, %v761
        %v774 = vmax.f32 %v770, %v762
        %v775 = vmax.f32 %v771, %v763
        %v776 = vmax.f32 %v772, %v773
        %v777 = vmax.f32 %v774, %v775
        %v778 = vmax.f32 %v776, %v777
        %v779 = vrot.slane %v778, 4
        %v780 = vmax.f32 %v778, %v779
        %v781 = vrot.slane %v780, 2
        %v782 = vmax.f32 %v780, %v781
        %v783 = vrot.slane %v782, 1
        %v784 = vmax.f32 %v782, %v783
        %v785 = vsub.f32 %v748, %v784
        %v786 = vsub.f32 %v749, %v784
        %v787 = vsub.f32 %v750, %v784
        %v788 = vsub.f32 %v751, %v784
        %v789 = vsub.f32 %v752, %v784
        %v790 = vsub.f32 %v753, %v784
        %v791 = vsub.f32 %v754, %v784
        %v792 = vsub.f32 %v755, %v784
        %v793 = vsub.f32 %v756, %v784
        %v794 = vsub.f32 %v757, %v784
        %v795 = vsub.f32 %v758, %v784
        %v796 = vsub.f32 %v759, %v784
        %v797 = vsub.f32 %v760, %v784
        %v798 = vsub.f32 %v761, %v784
        %v799 = vsub.f32 %v762, %v784
        %v800 = vsub.f32 %v763, %v784
        %v801 = vmul.f32 %v785, 1.442695
        %v802 = vpow.pop %v801
        %v803 = vmul.f32 %v786, 1.442695
        %v804 = vpow.pop %v803
        %v805 = vmul.f32 %v787, 1.442695
        %v806 = vpow.pop %v805
        %v807 = vmul.f32 %v788, 1.442695
        %v808 = vpow.pop %v807
        %v809 = vmul.f32 %v789, 1.442695
        %v810 = vpow.pop %v809
        %v811 = vmul.f32 %v790, 1.442695
        %v812 = vpow.pop %v811
        %v813 = vmul.f32 %v791, 1.442695
        %v814 = vpow.pop %v813
        %v815 = vmul.f32 %v792, 1.442695
        %v816 = vpow.pop %v815
        %v817 = vmul.f32 %v793, 1.442695
        %v818 = vpow.pop %v817
        %v819 = vmul.f32 %v794, 1.442695
        %v820 = vpow.pop %v819
        %v821 = vmul.f32 %v795, 1.442695
        %v822 = vpow.pop %v821
        %v823 = vmul.f32 %v796, 1.442695
        %v824 = vpow.pop %v823
        %v825 = vmul.f32 %v797, 1.442695
        %v826 = vpow.pop %v825
        %v827 = vmul.f32 %v798, 1.442695
        %v828 = vpow.pop %v827
        %v829 = vmul.f32 %v799, 1.442695
        %v830 = vpow.pop %v829
        %v831 = vmul.f32 %v800, 1.442695
        %v832 = vpow.pop %v831
        %v833 = vadd.f32 %v802, %v804
        %v834 = vadd.f32 %v833, %v806
        %v835 = vadd.f32 %v834, %v808
        %v836 = vadd.f32 %v835, %v810
        %v837 = vadd.f32 %v836, %v812
        %v838 = vadd.f32 %v837, %v814
        %v839 = vadd.f32 %v838, %v816
        %v840 = vadd.f32 %v839, %v818
        %v841 = vadd.f32 %v840, %v820
        %v842 = vadd.f32 %v841, %v822
        %v843 = vadd.f32 %v842, %v824
        %v844 = vadd.f32 %v843, %v826
        %v845 = vadd.f32 %v844, %v828
        %v846 = vadd.f32 %v845, %v830
        %v847 = vadd.f32 %v846, %v832
        %v848 = vrot.slane %v847, 4
        %v849 = vadd.f32 %v847, %v848
        %v850 = vrot.slane %v849, 2
        %v851 = vadd.f32 %v849, %v850
        %v852 = vrot.slane %v851, 1
        %v853 = vadd.f32 %v851, %v852
        %854 = vmatprep.subr.mxu0 0.0
        %855 = vmatpush1.msra.mxu0 %v832
        %856 = vmatprep.subr.mxu0 0.0
        %857 = vmatpush1.msra.mxu0 %v830
        %858 = vmatprep.subr.mxu0 0.0
        %859 = vmatpush1.msra.mxu0 %v828
        %860 = vmatprep.subr.mxu0 0.0
        %861 = vmatpush1.msra.mxu0 %v826
        %862 = vmatprep.subr.mxu0 0.0
        %863 = vmatpush1.msra.mxu0 %v824
        %864 = vmatprep.subr.mxu0 0.0
        %865 = vmatpush1.msra.mxu0 %v822
        %866 = vmatprep.subr.mxu0 0.0
        %867 = vmatpush1.msra.mxu0 %v820
        %868 = vmatprep.subr.mxu0 0.0
        %869 = vmatpush1.msra.mxu0 %v818
        %870 = vmatprep.subr.mxu0 0.0
        %871 = vmatpush1.msra.mxu0 %v816
        %872 = vmatprep.subr.mxu0 0.0
        %873 = vmatpush1.msra.mxu0 %v814
        %874 = vmatprep.subr.mxu0 0.0
        %875 = vmatpush1.msra.mxu0 %v812
        %876 = vmatprep.subr.mxu0 0.0
        %877 = vmatpush1.msra.mxu0 %v810
        %878 = vmatprep.subr.mxu0 0.0
        %879 = vmatpush1.msra.mxu0 %v808
        %880 = vmatprep.subr.mxu0 0.0
        %881 = vmatpush1.msra.mxu0 %v806
        %882 = vmatprep.subr.mxu0 0.0
        %883 = vmatpush1.msra.mxu0 %v804
        %884 = vmatprep.subr.mxu0 0.0
        %885 = vmatpush1.msra.mxu0 %v802
        %886 = vmatprep.subr.mxu0 0.0
        %887 = vmatpush2.msra.mxu0 0.0
        %888 = vmatprep.subr.mxu0 0.0
        %889 = vmatpush2.msra.mxu0 0.0
        %890 = vmatprep.subr.mxu0 0.0
        %891 = vmatpush2.msra.mxu0 0.0
        %892 = vmatprep.subr.mxu0 0.0
        %893 = vmatpush2.msra.mxu0 0.0
        %894 = vmatprep.subr.mxu0 0.0
        %895 = vmatpush2.msra.mxu0 0.0
        %896 = vmatprep.subr.mxu0 0.0
        %897 = vmatpush2.msra.mxu0 0.0
        %898 = vmatprep.subr.mxu0 0.0
        %899 = vmatpush2.msra.mxu0 0.0
        %900 = vmatprep.subr.mxu0 0.0
        %901 = vmatpush2.msra.mxu0 0.0
        %902 = vmatprep.subr.mxu0 0.0
        %903 = vmatpush2.msra.mxu0 0.0
        %904 = vmatprep.subr.mxu0 0.0
        %905 = vmatpush2.msra.mxu0 0.0
        %906 = vmatprep.subr.mxu0 0.0
        %907 = vmatpush2.msra.mxu0 0.0
        %908 = vmatprep.subr.mxu0 0.0
        %909 = vmatpush2.msra.mxu0 0.0
        %910 = vmatprep.subr.mxu0 0.0
        %911 = vmatpush2.msra.mxu0 0.0
        %912 = vmatprep.subr.mxu0 0.0
        %913 = vmatpush2.msra.mxu0 0.0
        %914 = vmatprep.subr.mxu0 0.0
        %915 = vmatpush2.msra.mxu0 0.0
        %916 = vmatprep.subr.mxu0 0.0
        %917 = vmatpush2.msra.mxu0 0.0
        %918 = vmatprep.mubr.f32.mxu0 0.0
        %919 = vmatmul.mubr.f32.gmra.mxu0 %v419
        %v920 = vpop.f32.mrf.mxu0
        %v921 = vadd.f32 0.0, %v920
        %v922 = vpop.f32.mrf.mxu0
        %923 = vmatprep.mubr.f32.mxu0 0.0
        %924 = vmatmul.mubr.f32.gmra.mxu0 %v424
        %v925 = vpop.f32.mrf.mxu0
        %v926 = vadd.f32 0.0, %v925
        %v927 = vpop.f32.mrf.mxu0
        %928 = vmatprep.mubr.f32.mxu0 0.0
        %929 = vmatmul.mubr.f32.gmra.mxu0 %v429
        %v930 = vpop.f32.mrf.mxu0
        %v931 = vadd.f32 0.0, %v930
        %v932 = vpop.f32.mrf.mxu0
        %933 = vmatprep.mubr.f32.mxu0 0.0
        %934 = vmatmul.mubr.f32.gmra.mxu0 %v434
        %v935 = vpop.f32.mrf.mxu0
        %v936 = vadd.f32 0.0, %v935
        %v937 = vpop.f32.mrf.mxu0
        %938 = vdwg.mxu0
        %v939 = vmul.f32 %v853, 4.0
        %v940 = vrcp.pop %v939
        %v941 = vmul.f32 %v921, %v940
        %v942 = vmul.f32 %v926, %v940
        %v943 = vmul.f32 %v931, %v940
        %v944 = vmul.f32 %v936, %v940
        %v945 = vadd.f32 %v941, 0.0
        %v946 = vadd.f32 %v942, 0.0
        %v947 = vadd.f32 %v943, 0.0
        %v948 = vadd.f32 %v944, 0.0
        %949 = vset.pattern.permute.xlu0 1
        %950 = vperm.xlu0 %949, %v584
        %v951 = vpop.permute.xlu0 %950
        %953 = vset.pattern.permute.xlu0 1
        %954 = vperm.xlu0 %953, %v585
        %v955 = vpop.permute.xlu0 %954
        %957 = vset.pattern.permute.xlu0 1
        %958 = vperm.xlu0 %957, %v586
        %v959 = vpop.permute.xlu0 %958
        %961 = vset.pattern.permute.xlu0 1
        %962 = vperm.xlu0 %961, %v587
        %v963 = vpop.permute.xlu0 %962
        %965 = vset.pattern.permute.xlu0 1
        %966 = vperm.xlu0 %965, %v588
        %v967 = vpop.permute.xlu0 %966
        %969 = vset.pattern.permute.xlu0 1
        %970 = vperm.xlu0 %969, %v589
        %v971 = vpop.permute.xlu0 %970
        %973 = vset.pattern.permute.xlu0 1
        %974 = vperm.xlu0 %973, %v590
        %v975 = vpop.permute.xlu0 %974
        %977 = vset.pattern.permute.xlu0 1
        %978 = vperm.xlu0 %977, %v591
        %v979 = vpop.permute.xlu0 %978
        %981 = vset.pattern.permute.xlu0 1
        %982 = vperm.xlu0 %981, %v592
        %v983 = vpop.permute.xlu0 %982
        %985 = vset.pattern.permute.xlu0 1
        %986 = vperm.xlu0 %985, %v593
        %v987 = vpop.permute.xlu0 %986
        %989 = vset.pattern.permute.xlu0 1
        %990 = vperm.xlu0 %989, %v594
        %v991 = vpop.permute.xlu0 %990
        %993 = vset.pattern.permute.xlu0 1
        %994 = vperm.xlu0 %993, %v595
        %v995 = vpop.permute.xlu0 %994
        %997 = vset.pattern.permute.xlu0 1
        %998 = vperm.xlu0 %997, %v596
        %v999 = vpop.permute.xlu0 %998
        %1001 = vset.pattern.permute.xlu0 1
        %1002 = vperm.xlu0 %1001, %v597
        %v1003 = vpop.permute.xlu0 %1002
        %1005 = vset.pattern.permute.xlu0 1
        %1006 = vperm.xlu0 %1005, %v598
        %v1007 = vpop.permute.xlu0 %1006
        %1009 = vset.pattern.permute.xlu0 1
        %1010 = vperm.xlu0 %1009, %v599
        %v1011 = vpop.permute.xlu0 %1010
        %v1013 = vlaneseq
        %v1014 = vshrl.u32 %v1013, 7
        %v1015 = vsub.s32 5, %v1014
        %v1016 = vrot.slane %v565, %v1015
        %v1017 = vadd.f32 %v951, %v1016
        %v1018 = vadd.f32 %v955, %v1016
        %v1019 = vadd.f32 %v959, %v1016
        %v1020 = vadd.f32 %v963, %v1016
        %v1021 = vadd.f32 %v967, %v1016
        %v1022 = vadd.f32 %v971, %v1016
        %v1023 = vadd.f32 %v975, %v1016
        %v1024 = vadd.f32 %v979, %v1016
        %v1025 = vadd.f32 %v983, %v1016
        %v1026 = vadd.f32 %v987, %v1016
        %v1027 = vadd.f32 %v991, %v1016
        %v1028 = vadd.f32 %v995, %v1016
        %v1029 = vadd.f32 %v999, %v1016
        %v1030 = vadd.f32 %v1003, %v1016
        %v1031 = vadd.f32 %v1007, %v1016
        %v1032 = vadd.f32 %v1011, %v1016
        %v1033 = vmul.f32 %v1017, 0.2
        %v1034 = vmul.f32 %v1018, 0.2
        %v1035 = vmul.f32 %v1019, 0.2
        %v1036 = vmul.f32 %v1020, 0.2
        %v1037 = vmul.f32 %v1021, 0.2
        %v1038 = vmul.f32 %v1022, 0.2
        %v1039 = vmul.f32 %v1023, 0.2
        %v1040 = vmul.f32 %v1024, 0.2
        %v1041 = vmul.f32 %v1025, 0.2
        %v1042 = vmul.f32 %v1026, 0.2
        %v1043 = vmul.f32 %v1027, 0.2
        %v1044 = vmul.f32 %v1028, 0.2
        %v1045 = vmul.f32 %v1029, 0.2
        %v1046 = vmul.f32 %v1030, 0.2
        %v1047 = vmul.f32 %v1031, 0.2
        %v1048 = vmul.f32 %v1032, 0.2
        %v1049 = vmax.f32 %v1017, %v1033
        %v1050 = vmax.f32 %v1018, %v1034
        %v1051 = vmax.f32 %v1019, %v1035
        %v1052 = vmax.f32 %v1020, %v1036
        %v1053 = vmax.f32 %v1021, %v1037
        %v1054 = vmax.f32 %v1022, %v1038
        %v1055 = vmax.f32 %v1023, %v1039
        %v1056 = vmax.f32 %v1024, %v1040
        %v1057 = vmax.f32 %v1025, %v1041
        %v1058 = vmax.f32 %v1026, %v1042
        %v1059 = vmax.f32 %v1027, %v1043
        %v1060 = vmax.f32 %v1028, %v1044
        %v1061 = vmax.f32 %v1029, %v1045
        %v1062 = vmax.f32 %v1030, %v1046
        %v1063 = vmax.f32 %v1031, %v1047
        %v1064 = vmax.f32 %v1032, %v1048
        %v1065 = vadd.f32 %v1049, %v600
        %v1066 = vadd.f32 %v1050, %v601
        %v1067 = vadd.f32 %v1051, %v602
        %v1068 = vadd.f32 %v1052, %v603
        %v1069 = vadd.f32 %v1053, %v604
        %v1070 = vadd.f32 %v1054, %v605
        %v1071 = vadd.f32 %v1055, %v606
        %v1072 = vadd.f32 %v1056, %v607
        %v1073 = vadd.f32 %v1057, %v608
        %v1074 = vadd.f32 %v1058, %v609
        %v1075 = vadd.f32 %v1059, %v610
        %v1076 = vadd.f32 %v1060, %v611
        %v1077 = vadd.f32 %v1061, %v612
        %v1078 = vadd.f32 %v1062, %v613
        %v1079 = vadd.f32 %v1063, %v614
        %v1080 = vadd.f32 %v1064, %v615
        %v1081 = vmax.f32 %v1065, %v1069
        %v1082 = vmax.f32 %v1066, %v1070
        %v1083 = vmax.f32 %v1067, %v1071
        %v1084 = vmax.f32 %v1068, %v1072
        %v1085 = vmax.f32 %v1081, %v1073
        %v1086 = vmax.f32 %v1082, %v1074
        %v1087 = vmax.f32 %v1083, %v1075
        %v1088 = vmax.f32 %v1084, %v1076
        %v1089 = vmax.f32 %v1085, %v1077
        %v1090 = vmax.f32 %v1086, %v1078
        %v1091 = vmax.f32 %v1087, %v1079
        %v1092 = vmax.f32 %v1088, %v1080
        %v1093 = vmax.f32 %v1089, %v1090
        %v1094 = vmax.f32 %v1091, %v1092
        %v1095 = vmax.f32 %v1093, %v1094
        %v1096 = vrot.slane %v1095, 4
        %v1097 = vmax.f32 %v1095, %v1096
        %v1098 = vrot.slane %v1097, 2
        %v1099 = vmax.f32 %v1097, %v1098
        %v1100 = vrot.slane %v1099, 1
        %v1101 = vmax.f32 %v1099, %v1100
        %v1102 = vsub.f32 %v1065, %v1101
        %v1103 = vsub.f32 %v1066, %v1101
        %v1104 = vsub.f32 %v1067, %v1101
        %v1105 = vsub.f32 %v1068, %v1101
        %v1106 = vsub.f32 %v1069, %v1101
        %v1107 = vsub.f32 %v1070, %v1101
        %v1108 = vsub.f32 %v1071, %v1101
        %v1109 = vsub.f32 %v1072, %v1101
        %v1110 = vsub.f32 %v1073, %v1101
        %v1111 = vsub.f32 %v1074, %v1101
        %v1112 = vsub.f32 %v1075, %v1101
        %v1113 = vsub.f32 %v1076, %v1101
        %v1114 = vsub.f32 %v1077, %v1101
        %v1115 = vsub.f32 %v1078, %v1101
        %v1116 = vsub.f32 %v1079, %v1101
        %v1117 = vsub.f32 %v1080, %v1101
        %v1118 = vmul.f32 %v1102, 1.442695
        %v1119 = vpow.pop %v1118
        %v1120 = vmul.f32 %v1103, 1.442695
        %v1121 = vpow.pop %v1120
        %v1122 = vmul.f32 %v1104, 1.442695
        %v1123 = vpow.pop %v1122
        %v1124 = vmul.f32 %v1105, 1.442695
        %v1125 = vpow.pop %v1124
        %v1126 = vmul.f32 %v1106, 1.442695
        %v1127 = vpow.pop %v1126
        %v1128 = vmul.f32 %v1107, 1.442695
        %v1129 = vpow.pop %v1128
        %v1130 = vmul.f32 %v1108, 1.442695
        %v1131 = vpow.pop %v1130
        %v1132 = vmul.f32 %v1109, 1.442695
        %v1133 = vpow.pop %v1132
        %v1134 = vmul.f32 %v1110, 1.442695
        %v1135 = vpow.pop %v1134
        %v1136 = vmul.f32 %v1111, 1.442695
        %v1137 = vpow.pop %v1136
        %v1138 = vmul.f32 %v1112, 1.442695
        %v1139 = vpow.pop %v1138
        %v1140 = vmul.f32 %v1113, 1.442695
        %v1141 = vpow.pop %v1140
        %v1142 = vmul.f32 %v1114, 1.442695
        %v1143 = vpow.pop %v1142
        %v1144 = vmul.f32 %v1115, 1.442695
        %v1145 = vpow.pop %v1144
        %v1146 = vmul.f32 %v1116, 1.442695
        %v1147 = vpow.pop %v1146
        %v1148 = vmul.f32 %v1117, 1.442695
        %v1149 = vpow.pop %v1148
        %v1150 = vadd.f32 %v1119, %v1121
        %v1151 = vadd.f32 %v1150, %v1123
        %v1152 = vadd.f32 %v1151, %v1125
        %v1153 = vadd.f32 %v1152, %v1127
        %v1154 = vadd.f32 %v1153, %v1129
        %v1155 = vadd.f32 %v1154, %v1131
        %v1156 = vadd.f32 %v1155, %v1133
        %v1157 = vadd.f32 %v1156, %v1135
        %v1158 = vadd.f32 %v1157, %v1137
        %v1159 = vadd.f32 %v1158, %v1139
        %v1160 = vadd.f32 %v1159, %v1141
        %v1161 = vadd.f32 %v1160, %v1143
        %v1162 = vadd.f32 %v1161, %v1145
        %v1163 = vadd.f32 %v1162, %v1147
        %v1164 = vadd.f32 %v1163, %v1149
        %v1165 = vrot.slane %v1164, 4
        %v1166 = vadd.f32 %v1164, %v1165
        %v1167 = vrot.slane %v1166, 2
        %v1168 = vadd.f32 %v1166, %v1167
        %v1169 = vrot.slane %v1168, 1
        %v1170 = vadd.f32 %v1168, %v1169
        %1171 = vmatprep.subr.mxu0 0.0
        %1172 = vmatpush1.msra.mxu0 %v1149
        %1173 = vmatprep.subr.mxu0 0.0
        %1174 = vmatpush1.msra.mxu0 %v1147
        %1175 = vmatprep.subr.mxu0 0.0
        %1176 = vmatpush1.msra.mxu0 %v1145
        %1177 = vmatprep.subr.mxu0 0.0
        %1178 = vmatpush1.msra.mxu0 %v1143
        %1179 = vmatprep.subr.mxu0 0.0
        %1180 = vmatpush1.msra.mxu0 %v1141
        %1181 = vmatprep.subr.mxu0 0.0
        %1182 = vmatpush1.msra.mxu0 %v1139
        %1183 = vmatprep.subr.mxu0 0.0
        %1184 = vmatpush1.msra.mxu0 %v1137
        %1185 = vmatprep.subr.mxu0 0.0
        %1186 = vmatpush1.msra.mxu0 %v1135
        %1187 = vmatprep.subr.mxu0 0.0
        %1188 = vmatpush1.msra.mxu0 %v1133
        %1189 = vmatprep.subr.mxu0 0.0
        %1190 = vmatpush1.msra.mxu0 %v1131
        %1191 = vmatprep.subr.mxu0 0.0
        %1192 = vmatpush1.msra.mxu0 %v1129
        %1193 = vmatprep.subr.mxu0 0.0
        %1194 = vmatpush1.msra.mxu0 %v1127
        %1195 = vmatprep.subr.mxu0 0.0
        %1196 = vmatpush1.msra.mxu0 %v1125
        %1197 = vmatprep.subr.mxu0 0.0
        %1198 = vmatpush1.msra.mxu0 %v1123
        %1199 = vmatprep.subr.mxu0 0.0
        %1200 = vmatpush1.msra.mxu0 %v1121
        %1201 = vmatprep.subr.mxu0 0.0
        %1202 = vmatpush1.msra.mxu0 %v1119
        %1203 = vmatprep.subr.mxu0 0.0
        %1204 = vmatpush2.msra.mxu0 0.0
        %1205 = vmatprep.subr.mxu0 0.0
        %1206 = vmatpush2.msra.mxu0 0.0
        %1207 = vmatprep.subr.mxu0 0.0
        %1208 = vmatpush2.msra.mxu0 0.0
        %1209 = vmatprep.subr.mxu0 0.0
        %1210 = vmatpush2.msra.mxu0 0.0
        %1211 = vmatprep.subr.mxu0 0.0
        %1212 = vmatpush2.msra.mxu0 0.0
        %1213 = vmatprep.subr.mxu0 0.0
        %1214 = vmatpush2.msra.mxu0 0.0
        %1215 = vmatprep.subr.mxu0 0.0
        %1216 = vmatpush2.msra.mxu0 0.0
        %1217 = vmatprep.subr.mxu0 0.0
        %1218 = vmatpush2.msra.mxu0 0.0
        %1219 = vmatprep.subr.mxu0 0.0
        %1220 = vmatpush2.msra.mxu0 0.0
        %1221 = vmatprep.subr.mxu0 0.0
        %1222 = vmatpush2.msra.mxu0 0.0
        %1223 = vmatprep.subr.mxu0 0.0
        %1224 = vmatpush2.msra.mxu0 0.0
        %1225 = vmatprep.subr.mxu0 0.0
        %1226 = vmatpush2.msra.mxu0 0.0
        %1227 = vmatprep.subr.mxu0 0.0
        %1228 = vmatpush2.msra.mxu0 0.0
        %1229 = vmatprep.subr.mxu0 0.0
        %1230 = vmatpush2.msra.mxu0 0.0
        %1231 = vmatprep.subr.mxu0 0.0
        %1232 = vmatpush2.msra.mxu0 0.0
        %1233 = vmatprep.subr.mxu0 0.0
        %1234 = vmatpush2.msra.mxu0 0.0
        %1235 = vmatprep.mubr.f32.mxu0 0.0
        %1236 = vmatmul.mubr.f32.gmra.mxu0 %v439
        %v1237 = vpop.f32.mrf.mxu0
        %v1238 = vadd.f32 0.0, %v1237
        %v1239 = vpop.f32.mrf.mxu0
        %1240 = vmatprep.mubr.f32.mxu0 0.0
        %1241 = vmatmul.mubr.f32.gmra.mxu0 %v444
        %v1242 = vpop.f32.mrf.mxu0
        %v1243 = vadd.f32 0.0, %v1242
        %v1244 = vpop.f32.mrf.mxu0
        %1245 = vmatprep.mubr.f32.mxu0 0.0
        %1246 = vmatmul.mubr.f32.gmra.mxu0 %v449
        %v1247 = vpop.f32.mrf.mxu0
        %v1248 = vadd.f32 0.0, %v1247
        %v1249 = vpop.f32.mrf.mxu0
        %1250 = vmatprep.mubr.f32.mxu0 0.0
        %1251 = vmatmul.mubr.f32.gmra.mxu0 %v454
        %v1252 = vpop.f32.mrf.mxu0
        %v1253 = vadd.f32 0.0, %v1252
        %v1254 = vpop.f32.mrf.mxu0
        %1255 = vdwg.mxu0
        %v1256 = vmul.f32 %v1170, 4.0
        %v1257 = vrcp.pop %v1256
        %v1258 = vmul.f32 %v1238, %v1257
        %v1259 = vmul.f32 %v1243, %v1257
        %v1260 = vmul.f32 %v1248, %v1257
        %v1261 = vmul.f32 %v1253, %v1257
        %v1262 = vadd.f32 %v945, %v1258
        %v1263 = vadd.f32 %v946, %v1259
        %v1264 = vadd.f32 %v947, %v1260
        %v1265 = vadd.f32 %v948, %v1261
        %1266 = vset.pattern.permute.xlu0 2
        %1267 = vperm.xlu0 %1266, %v584
        %v1268 = vpop.permute.xlu0 %1267
        %1270 = vset.pattern.permute.xlu0 2
        %1271 = vperm.xlu0 %1270, %v585
        %v1272 = vpop.permute.xlu0 %1271
        %1274 = vset.pattern.permute.xlu0 2
        %1275 = vperm.xlu0 %1274, %v586
        %v1276 = vpop.permute.xlu0 %1275
        %1278 = vset.pattern.permute.xlu0 2
        %1279 = vperm.xlu0 %1278, %v587
        %v1280 = vpop.permute.xlu0 %1279
        %1282 = vset.pattern.permute.xlu0 2
        %1283 = vperm.xlu0 %1282, %v588
        %v1284 = vpop.permute.xlu0 %1283
        %1286 = vset.pattern.permute.xlu0 2
        %1287 = vperm.xlu0 %1286, %v589
        %v1288 = vpop.permute.xlu0 %1287
        %1290 = vset.pattern.permute.xlu0 2
        %1291 = vperm.xlu0 %1290, %v590
        %v1292 = vpop.permute.xlu0 %1291
        %1294 = vset.pattern.permute.xlu0 2
        %1295 = vperm.xlu0 %1294, %v591
        %v1296 = vpop.permute.xlu0 %1295
        %1298 = vset.pattern.permute.xlu0 2
        %1299 = vperm.xlu0 %1298, %v592
        %v1300 = vpop.permute.xlu0 %1299
        %1302 = vset.pattern.permute.xlu0 2
        %1303 = vperm.xlu0 %1302, %v593
        %v1304 = vpop.permute.xlu0 %1303
        %1306 = vset.pattern.permute.xlu0 2
        %1307 = vperm.xlu0 %1306, %v594
        %v1308 = vpop.permute.xlu0 %1307
        %1310 = vset.pattern.permute.xlu0 2
        %1311 = vperm.xlu0 %1310, %v595
        %v1312 = vpop.permute.xlu0 %1311
        %1314 = vset.pattern.permute.xlu0 2
        %1315 = vperm.xlu0 %1314, %v596
        %v1316 = vpop.permute.xlu0 %1315
        %1318 = vset.pattern.permute.xlu0 2
        %1319 = vperm.xlu0 %1318, %v597
        %v1320 = vpop.permute.xlu0 %1319
        %1322 = vset.pattern.permute.xlu0 2
        %1323 = vperm.xlu0 %1322, %v598
        %v1324 = vpop.permute.xlu0 %1323
        %1326 = vset.pattern.permute.xlu0 2
        %1327 = vperm.xlu0 %1326, %v599
        %v1328 = vpop.permute.xlu0 %1327
        %v1330 = vlaneseq
        %v1331 = vshrl.u32 %v1330, 7
        %v1332 = vsub.s32 6, %v1331
        %v1333 = vrot.slane %v565, %v1332
        %v1334 = vadd.f32 %v1268, %v1333
        %v1335 = vadd.f32 %v1272, %v1333
        %v1336 = vadd.f32 %v1276, %v1333
        %v1337 = vadd.f32 %v1280, %v1333
        %v1338 = vadd.f32 %v1284, %v1333
        %v1339 = vadd.f32 %v1288, %v1333
        %v1340 = vadd.f32 %v1292, %v1333
        %v1341 = vadd.f32 %v1296, %v1333
        %v1342 = vadd.f32 %v1300, %v1333
        %v1343 = vadd.f32 %v1304, %v1333
        %v1344 = vadd.f32 %v1308, %v1333
        %v1345 = vadd.f32 %v1312, %v1333
        %v1346 = vadd.f32 %v1316, %v1333
        %v1347 = vadd.f32 %v1320, %v1333
        %v1348 = vadd.f32 %v1324, %v1333
        %v1349 = vadd.f32 %v1328, %v1333
        %v1350 = vmul.f32 %v1334, 0.2
        %v1351 = vmul.f32 %v1335, 0.2
        %v1352 = vmul.f32 %v1336, 0.2
        %v1353 = vmul.f32 %v1337, 0.2
        %v1354 = vmul.f32 %v1338, 0.2
        %v1355 = vmul.f32 %v1339, 0.2
        %v1356 = vmul.f32 %v1340, 0.2
        %v1357 = vmul.f32 %v1341, 0.2
        %v1358 = vmul.f32 %v1342, 0.2
        %v1359 = vmul.f32 %v1343, 0.2
        %v1360 = vmul.f32 %v1344, 0.2
        %v1361 = vmul.f32 %v1345, 0.2
        %v1362 = vmul.f32 %v1346, 0.2
        %v1363 = vmul.f32 %v1347, 0.2
        %v1364 = vmul.f32 %v1348, 0.2
        %v1365 = vmul.f32 %v1349, 0.2
        %v1366 = vmax.f32 %v1334, %v1350
        %v1367 = vmax.f32 %v1335, %v1351
        %v1368 = vmax.f32 %v1336, %v1352
        %v1369 = vmax.f32 %v1337, %v1353
        %v1370 = vmax.f32 %v1338, %v1354
        %v1371 = vmax.f32 %v1339, %v1355
        %v1372 = vmax.f32 %v1340, %v1356
        %v1373 = vmax.f32 %v1341, %v1357
        %v1374 = vmax.f32 %v1342, %v1358
        %v1375 = vmax.f32 %v1343, %v1359
        %v1376 = vmax.f32 %v1344, %v1360
        %v1377 = vmax.f32 %v1345, %v1361
        %v1378 = vmax.f32 %v1346, %v1362
        %v1379 = vmax.f32 %v1347, %v1363
        %v1380 = vmax.f32 %v1348, %v1364
        %v1381 = vmax.f32 %v1349, %v1365
        %v1382 = vadd.f32 %v1366, %v600
        %v1383 = vadd.f32 %v1367, %v601
        %v1384 = vadd.f32 %v1368, %v602
        %v1385 = vadd.f32 %v1369, %v603
        %v1386 = vadd.f32 %v1370, %v604
        %v1387 = vadd.f32 %v1371, %v605
        %v1388 = vadd.f32 %v1372, %v606
        %v1389 = vadd.f32 %v1373, %v607
        %v1390 = vadd.f32 %v1374, %v608
        %v1391 = vadd.f32 %v1375, %v609
        %v1392 = vadd.f32 %v1376, %v610
        %v1393 = vadd.f32 %v1377, %v611
        %v1394 = vadd.f32 %v1378, %v612
        %v1395 = vadd.f32 %v1379, %v613
        %v1396 = vadd.f32 %v1380, %v614
        %v1397 = vadd.f32 %v1381, %v615
        %v1398 = vmax.f32 %v1382, %v1386
        %v1399 = vmax.f32 %v1383, %v1387
        %v1400 = vmax.f32 %v1384, %v1388
        %v1401 = vmax.f32 %v1385, %v1389
        %v1402 = vmax.f32 %v1398, %v1390
        %v1403 = vmax.f32 %v1399, %v1391
        %v1404 = vmax.f32 %v1400, %v1392
        %v1405 = vmax.f32 %v1401, %v1393
        %v1406 = vmax.f32 %v1402, %v1394
        %v1407 = vmax.f32 %v1403, %v1395
        %v1408 = vmax.f32 %v1404, %v1396
        %v1409 = vmax.f32 %v1405, %v1397
        %v1410 = vmax.f32 %v1406, %v1407
        %v1411 = vmax.f32 %v1408, %v1409
        %v1412 = vmax.f32 %v1410, %v1411
        %v1413 = vrot.slane %v1412, 4
        %v1414 = vmax.f32 %v1412, %v1413
        %v1415 = vrot.slane %v1414, 2
        %v1416 = vmax.f32 %v1414, %v1415
        %v1417 = vrot.slane %v1416, 1
        %v1418 = vmax.f32 %v1416, %v1417
        %v1419 = vsub.f32 %v1382, %v1418
        %v1420 = vsub.f32 %v1383, %v1418
        %v1421 = vsub.f32 %v1384, %v1418
        %v1422 = vsub.f32 %v1385, %v1418
        %v1423 = vsub.f32 %v1386, %v1418
        %v1424 = vsub.f32 %v1387, %v1418
        %v1425 = vsub.f32 %v1388, %v1418
        %v1426 = vsub.f32 %v1389, %v1418
        %v1427 = vsub.f32 %v1390, %v1418
        %v1428 = vsub.f32 %v1391, %v1418
        %v1429 = vsub.f32 %v1392, %v1418
        %v1430 = vsub.f32 %v1393, %v1418
        %v1431 = vsub.f32 %v1394, %v1418
        %v1432 = vsub.f32 %v1395, %v1418
        %v1433 = vsub.f32 %v1396, %v1418
        %v1434 = vsub.f32 %v1397, %v1418
        %v1435 = vmul.f32 %v1419, 1.442695
        %v1436 = vpow.pop %v1435
        %v1437 = vmul.f32 %v1420, 1.442695
        %v1438 = vpow.pop %v1437
        %v1439 = vmul.f32 %v1421, 1.442695
        %v1440 = vpow.pop %v1439
        %v1441 = vmul.f32 %v1422, 1.442695
        %v1442 = vpow.pop %v1441
        %v1443 = vmul.f32 %v1423, 1.442695
        %v1444 = vpow.pop %v1443
        %v1445 = vmul.f32 %v1424, 1.442695
        %v1446 = vpow.pop %v1445
        %v1447 = vmul.f32 %v1425, 1.442695
        %v1448 = vpow.pop %v1447
        %v1449 = vmul.f32 %v1426, 1.442695
        %v1450 = vpow.pop %v1449
        %v1451 = vmul.f32 %v1427, 1.442695
        %v1452 = vpow.pop %v1451
        %v1453 = vmul.f32 %v1428, 1.442695
        %v1454 = vpow.pop %v1453
        %v1455 = vmul.f32 %v1429, 1.442695
        %v1456 = vpow.pop %v1455
        %v1457 = vmul.f32 %v1430, 1.442695
        %v1458 = vpow.pop %v1457
        %v1459 = vmul.f32 %v1431, 1.442695
        %v1460 = vpow.pop %v1459
        %v1461 = vmul.f32 %v1432, 1.442695
        %v1462 = vpow.pop %v1461
        %v1463 = vmul.f32 %v1433, 1.442695
        %v1464 = vpow.pop %v1463
        %v1465 = vmul.f32 %v1434, 1.442695
        %v1466 = vpow.pop %v1465
        %v1467 = vadd.f32 %v1436, %v1438
        %v1468 = vadd.f32 %v1467, %v1440
        %v1469 = vadd.f32 %v1468, %v1442
        %v1470 = vadd.f32 %v1469, %v1444
        %v1471 = vadd.f32 %v1470, %v1446
        %v1472 = vadd.f32 %v1471, %v1448
        %v1473 = vadd.f32 %v1472, %v1450
        %v1474 = vadd.f32 %v1473, %v1452
        %v1475 = vadd.f32 %v1474, %v1454
        %v1476 = vadd.f32 %v1475, %v1456
        %v1477 = vadd.f32 %v1476, %v1458
        %v1478 = vadd.f32 %v1477, %v1460
        %v1479 = vadd.f32 %v1478, %v1462
        %v1480 = vadd.f32 %v1479, %v1464
        %v1481 = vadd.f32 %v1480, %v1466
        %v1482 = vrot.slane %v1481, 4
        %v1483 = vadd.f32 %v1481, %v1482
        %v1484 = vrot.slane %v1483, 2
        %v1485 = vadd.f32 %v1483, %v1484
        %v1486 = vrot.slane %v1485, 1
        %v1487 = vadd.f32 %v1485, %v1486
        %1488 = vmatprep.subr.mxu0 0.0
        %1489 = vmatpush1.msra.mxu0 %v1466
        %1490 = vmatprep.subr.mxu0 0.0
        %1491 = vmatpush1.msra.mxu0 %v1464
        %1492 = vmatprep.subr.mxu0 0.0
        %1493 = vmatpush1.msra.mxu0 %v1462
        %1494 = vmatprep.subr.mxu0 0.0
        %1495 = vmatpush1.msra.mxu0 %v1460
        %1496 = vmatprep.subr.mxu0 0.0
        %1497 = vmatpush1.msra.mxu0 %v1458
        %1498 = vmatprep.subr.mxu0 0.0
        %1499 = vmatpush1.msra.mxu0 %v1456
        %1500 = vmatprep.subr.mxu0 0.0
        %1501 = vmatpush1.msra.mxu0 %v1454
        %1502 = vmatprep.subr.mxu0 0.0
        %1503 = vmatpush1.msra.mxu0 %v1452
        %1504 = vmatprep.subr.mxu0 0.0
        %1505 = vmatpush1.msra.mxu0 %v1450
        %1506 = vmatprep.subr.mxu0 0.0
        %1507 = vmatpush1.msra.mxu0 %v1448
        %1508 = vmatprep.subr.mxu0 0.0
        %1509 = vmatpush1.msra.mxu0 %v1446
        %1510 = vmatprep.subr.mxu0 0.0
        %1511 = vmatpush1.msra.mxu0 %v1444
        %1512 = vmatprep.subr.mxu0 0.0
        %1513 = vmatpush1.msra.mxu0 %v1442
        %1514 = vmatprep.subr.mxu0 0.0
        %1515 = vmatpush1.msra.mxu0 %v1440
        %1516 = vmatprep.subr.mxu0 0.0
        %1517 = vmatpush1.msra.mxu0 %v1438
        %1518 = vmatprep.subr.mxu0 0.0
        %1519 = vmatpush1.msra.mxu0 %v1436
        %1520 = vmatprep.subr.mxu0 0.0
        %1521 = vmatpush2.msra.mxu0 0.0
        %1522 = vmatprep.subr.mxu0 0.0
        %1523 = vmatpush2.msra.mxu0 0.0
        %1524 = vmatprep.subr.mxu0 0.0
        %1525 = vmatpush2.msra.mxu0 0.0
        %1526 = vmatprep.subr.mxu0 0.0
        %1527 = vmatpush2.msra.mxu0 0.0
        %1528 = vmatprep.subr.mxu0 0.0
        %1529 = vmatpush2.msra.mxu0 0.0
        %1530 = vmatprep.subr.mxu0 0.0
        %1531 = vmatpush2.msra.mxu0 0.0
        %1532 = vmatprep.subr.mxu0 0.0
        %1533 = vmatpush2.msra.mxu0 0.0
        %1534 = vmatprep.subr.mxu0 0.0
        %1535 = vmatpush2.msra.mxu0 0.0
        %1536 = vmatprep.subr.mxu0 0.0
        %1537 = vmatpush2.msra.mxu0 0.0
        %1538 = vmatprep.subr.mxu0 0.0
        %1539 = vmatpush2.msra.mxu0 0.0
        %1540 = vmatprep.subr.mxu0 0.0
        %1541 = vmatpush2.msra.mxu0 0.0
        %1542 = vmatprep.subr.mxu0 0.0
        %1543 = vmatpush2.msra.mxu0 0.0
        %1544 = vmatprep.subr.mxu0 0.0
        %1545 = vmatpush2.msra.mxu0 0.0
        %1546 = vmatprep.subr.mxu0 0.0
        %1547 = vmatpush2.msra.mxu0 0.0
        %1548 = vmatprep.subr.mxu0 0.0
        %1549 = vmatpush2.msra.mxu0 0.0
        %1550 = vmatprep.subr.mxu0 0.0
        %1551 = vmatpush2.msra.mxu0 0.0
        %1552 = vmatprep.mubr.f32.mxu0 0.0
        %1553 = vmatmul.mubr.f32.gmra.mxu0 %v459
        %v1554 = vpop.f32.mrf.mxu0
        %v1555 = vadd.f32 0.0, %v1554
        %v1556 = vpop.f32.mrf.mxu0
        %1557 = vmatprep.mubr.f32.mxu0 0.0
        %1558 = vmatmul.mubr.f32.gmra.mxu0 %v464
        %v1559 = vpop.f32.mrf.mxu0
        %v1560 = vadd.f32 0.0, %v1559
        %v1561 = vpop.f32.mrf.mxu0
        %1562 = vmatprep.mubr.f32.mxu0 0.0
        %1563 = vmatmul.mubr.f32.gmra.mxu0 %v469
        %v1564 = vpop.f32.mrf.mxu0
        %v1565 = vadd.f32 0.0, %v1564
        %v1566 = vpop.f32.mrf.mxu0
        %1567 = vmatprep.mubr.f32.mxu0 0.0
        %1568 = vmatmul.mubr.f32.gmra.mxu0 %v474
        %v1569 = vpop.f32.mrf.mxu0
        %v1570 = vadd.f32 0.0, %v1569
        %v1571 = vpop.f32.mrf.mxu0
        %1572 = vdwg.mxu0
        %v1573 = vmul.f32 %v1487, 4.0
        %v1574 = vrcp.pop %v1573
        %v1575 = vmul.f32 %v1555, %v1574
        %v1576 = vmul.f32 %v1560, %v1574
        %v1577 = vmul.f32 %v1565, %v1574
        %v1578 = vmul.f32 %v1570, %v1574
        %v1579 = vadd.f32 %v1262, %v1575
        %v1580 = vadd.f32 %v1263, %v1576
        %v1581 = vadd.f32 %v1264, %v1577
        %v1582 = vadd.f32 %v1265, %v1578
        %1583 = vset.pattern.permute.xlu0 3
        %1584 = vperm.xlu0 %1583, %v584
        %v1585 = vpop.permute.xlu0 %1584
        %1587 = vset.pattern.permute.xlu0 3
        %1588 = vperm.xlu0 %1587, %v585
        %v1589 = vpop.permute.xlu0 %1588
        %1591 = vset.pattern.permute.xlu0 3
        %1592 = vperm.xlu0 %1591, %v586
        %v1593 = vpop.permute.xlu0 %1592
        %1595 = vset.pattern.permute.xlu0 3
        %1596 = vperm.xlu0 %1595, %v587
        %v1597 = vpop.permute.xlu0 %1596
        %1599 = vset.pattern.permute.xlu0 3
        %1600 = vperm.xlu0 %1599, %v588
        %v1601 = vpop.permute.xlu0 %1600
        %1603 = vset.pattern.permute.xlu0 3
        %1604 = vperm.xlu0 %1603, %v589
        %v1605 = vpop.permute.xlu0 %1604
        %1607 = vset.pattern.permute.xlu0 3
        %1608 = vperm.xlu0 %1607, %v590
        %v1609 = vpop.permute.xlu0 %1608
        %1611 = vset.pattern.permute.xlu0 3
        %1612 = vperm.xlu0 %1611, %v591
        %v1613 = vpop.permute.xlu0 %1612
        %1615 = vset.pattern.permute.xlu0 3
        %1616 = vperm.xlu0 %1615, %v592
        %v1617 = vpop.permute.xlu0 %1616
        %1619 = vset.pattern.permute.xlu0 3
        %1620 = vperm.xlu0 %1619, %v593
        %v1621 = vpop.permute.xlu0 %1620
        %1623 = vset.pattern.permute.xlu0 3
        %1624 = vperm.xlu0 %1623, %v594
        %v1625 = vpop.permute.xlu0 %1624
        %1627 = vset.pattern.permute.xlu0 3
        %1628 = vperm.xlu0 %1627, %v595
        %v1629 = vpop.permute.xlu0 %1628
        %1631 = vset.pattern.permute.xlu0 3
        %1632 = vperm.xlu0 %1631, %v596
        %v1633 = vpop.permute.xlu0 %1632
        %1635 = vset.pattern.permute.xlu0 3
        %1636 = vperm.xlu0 %1635, %v597
        %v1637 = vpop.permute.xlu0 %1636
        %1639 = vset.pattern.permute.xlu0 3
        %1640 = vperm.xlu0 %1639, %v598
        %v1641 = vpop.permute.xlu0 %1640
        %1643 = vset.pattern.permute.xlu0 3
        %1644 = vperm.xlu0 %1643, %v599
        %v1645 = vpop.permute.xlu0 %1644
        %v1647 = vlaneseq
        %v1648 = vshrl.u32 %v1647, 7
        %v1649 = vsub.s32 7, %v1648
        %v1650 = vrot.slane %v565, %v1649
        %v1651 = vadd.f32 %v1585, %v1650
        %v1652 = vadd.f32 %v1589, %v1650
        %v1653 = vadd.f32 %v1593, %v1650
        %v1654 = vadd.f32 %v1597, %v1650
        %v1655 = vadd.f32 %v1601, %v1650
        %v1656 = vadd.f32 %v1605, %v1650
        %v1657 = vadd.f32 %v1609, %v1650
        %v1658 = vadd.f32 %v1613, %v1650
        %v1659 = vadd.f32 %v1617, %v1650
        %v1660 = vadd.f32 %v1621, %v1650
        %v1661 = vadd.f32 %v1625, %v1650
        %v1662 = vadd.f32 %v1629, %v1650
        %v1663 = vadd.f32 %v1633, %v1650
        %v1664 = vadd.f32 %v1637, %v1650
        %v1665 = vadd.f32 %v1641, %v1650
        %v1666 = vadd.f32 %v1645, %v1650
        %v1667 = vmul.f32 %v1651, 0.2
        %v1668 = vmul.f32 %v1652, 0.2
        %v1669 = vmul.f32 %v1653, 0.2
        %v1670 = vmul.f32 %v1654, 0.2
        %v1671 = vmul.f32 %v1655, 0.2
        %v1672 = vmul.f32 %v1656, 0.2
        %v1673 = vmul.f32 %v1657, 0.2
        %v1674 = vmul.f32 %v1658, 0.2
        %v1675 = vmul.f32 %v1659, 0.2
        %v1676 = vmul.f32 %v1660, 0.2
        %v1677 = vmul.f32 %v1661, 0.2
        %v1678 = vmul.f32 %v1662, 0.2
        %v1679 = vmul.f32 %v1663, 0.2
        %v1680 = vmul.f32 %v1664, 0.2
        %v1681 = vmul.f32 %v1665, 0.2
        %v1682 = vmul.f32 %v1666, 0.2
        %v1683 = vmax.f32 %v1651, %v1667
        %v1684 = vmax.f32 %v1652, %v1668
        %v1685 = vmax.f32 %v1653, %v1669
        %v1686 = vmax.f32 %v1654, %v1670
        %v1687 = vmax.f32 %v1655, %v1671
        %v1688 = vmax.f32 %v1656, %v1672
        %v1689 = vmax.f32 %v1657, %v1673
        %v1690 = vmax.f32 %v1658, %v1674
        %v1691 = vmax.f32 %v1659, %v1675
        %v1692 = vmax.f32 %v1660, %v1676
        %v1693 = vmax.f32 %v1661, %v1677
        %v1694 = vmax.f32 %v1662, %v1678
        %v1695 = vmax.f32 %v1663, %v1679
        %v1696 = vmax.f32 %v1664, %v1680
        %v1697 = vmax.f32 %v1665, %v1681
        %v1698 = vmax.f32 %v1666, %v1682
        %v1699 = vadd.f32 %v1683, %v600
        %v1700 = vadd.f32 %v1684, %v601
        %v1701 = vadd.f32 %v1685, %v602
        %v1702 = vadd.f32 %v1686, %v603
        %v1703 = vadd.f32 %v1687, %v604
        %v1704 = vadd.f32 %v1688, %v605
        %v1705 = vadd.f32 %v1689, %v606
        %v1706 = vadd.f32 %v1690, %v607
        %v1707 = vadd.f32 %v1691, %v608
        %v1708 = vadd.f32 %v1692, %v609
        %v1709 = vadd.f32 %v1693, %v610
        %v1710 = vadd.f32 %v1694, %v611
        %v1711 = vadd.f32 %v1695, %v612
        %v1712 = vadd.f32 %v1696, %v613
        %v1713 = vadd.f32 %v1697, %v614
        %v1714 = vadd.f32 %v1698, %v615
        %v1715 = vmax.f32 %v1699, %v1703
        %v1716 = vmax.f32 %v1700, %v1704
        %v1717 = vmax.f32 %v1701, %v1705
        %v1718 = vmax.f32 %v1702, %v1706
        %v1719 = vmax.f32 %v1715, %v1707
        %v1720 = vmax.f32 %v1716, %v1708
        %v1721 = vmax.f32 %v1717, %v1709
        %v1722 = vmax.f32 %v1718, %v1710
        %v1723 = vmax.f32 %v1719, %v1711
        %v1724 = vmax.f32 %v1720, %v1712
        %v1725 = vmax.f32 %v1721, %v1713
        %v1726 = vmax.f32 %v1722, %v1714
        %v1727 = vmax.f32 %v1723, %v1724
        %v1728 = vmax.f32 %v1725, %v1726
        %v1729 = vmax.f32 %v1727, %v1728
        %v1730 = vrot.slane %v1729, 4
        %v1731 = vmax.f32 %v1729, %v1730
        %v1732 = vrot.slane %v1731, 2
        %v1733 = vmax.f32 %v1731, %v1732
        %v1734 = vrot.slane %v1733, 1
        %v1735 = vmax.f32 %v1733, %v1734
        %v1736 = vsub.f32 %v1699, %v1735
        %v1737 = vsub.f32 %v1700, %v1735
        %v1738 = vsub.f32 %v1701, %v1735
        %v1739 = vsub.f32 %v1702, %v1735
        %v1740 = vsub.f32 %v1703, %v1735
        %v1741 = vsub.f32 %v1704, %v1735
        %v1742 = vsub.f32 %v1705, %v1735
        %v1743 = vsub.f32 %v1706, %v1735
        %v1744 = vsub.f32 %v1707, %v1735
        %v1745 = vsub.f32 %v1708, %v1735
        %v1746 = vsub.f32 %v1709, %v1735
        %v1747 = vsub.f32 %v1710, %v1735
        %v1748 = vsub.f32 %v1711, %v1735
        %v1749 = vsub.f32 %v1712, %v1735
        %v1750 = vsub.f32 %v1713, %v1735
        %v1751 = vsub.f32 %v1714, %v1735
        %v1752 = vmul.f32 %v1736, 1.442695
        %v1753 = vpow.pop %v1752
        %v1754 = vmul.f32 %v1737, 1.442695
        %v1755 = vpow.pop %v1754
        %v1756 = vmul.f32 %v1738, 1.442695
        %v1757 = vpow.pop %v1756
        %v1758 = vmul.f32 %v1739, 1.442695
        %v1759 = vpow.pop %v1758
        %v1760 = vmul.f32 %v1740, 1.442695
        %v1761 = vpow.pop %v1760
        %v1762 = vmul.f32 %v1741, 1.442695
        %v1763 = vpow.pop %v1762
        %v1764 = vmul.f32 %v1742, 1.442695
        %v1765 = vpow.pop %v1764
        %v1766 = vmul.f32 %v1743, 1.442695
        %v1767 = vpow.pop %v1766
        %v1768 = vmul.f32 %v1744, 1.442695
        %v1769 = vpow.pop %v1768
        %v1770 = vmul.f32 %v1745, 1.442695
        %v1771 = vpow.pop %v1770
        %v1772 = vmul.f32 %v1746, 1.442695
        %v1773 = vpow.pop %v1772
        %v1774 = vmul.f32 %v1747, 1.442695
        %v1775 = vpow.pop %v1774
        %v1776 = vmul.f32 %v1748, 1.442695
        %v1777 = vpow.pop %v1776
        %v1778 = vmul.f32 %v1749, 1.442695
        %v1779 = vpow.pop %v1778
        %v1780 = vmul.f32 %v1750, 1.442695
        %v1781 = vpow.pop %v1780
        %v1782 = vmul.f32 %v1751, 1.442695
        %v1783 = vpow.pop %v1782
        %v1784 = vadd.f32 %v1753, %v1755
        %v1785 = vadd.f32 %v1784, %v1757
        %v1786 = vadd.f32 %v1785, %v1759
        %v1787 = vadd.f32 %v1786, %v1761
        %v1788 = vadd.f32 %v1787, %v1763
        %v1789 = vadd.f32 %v1788, %v1765
        %v1790 = vadd.f32 %v1789, %v1767
        %v1791 = vadd.f32 %v1790, %v1769
        %v1792 = vadd.f32 %v1791, %v1771
        %v1793 = vadd.f32 %v1792, %v1773
        %v1794 = vadd.f32 %v1793, %v1775
        %v1795 = vadd.f32 %v1794, %v1777
        %v1796 = vadd.f32 %v1795, %v1779
        %v1797 = vadd.f32 %v1796, %v1781
        %v1798 = vadd.f32 %v1797, %v1783
        %v1799 = vrot.slane %v1798, 4
        %v1800 = vadd.f32 %v1798, %v1799
        %v1801 = vrot.slane %v1800, 2
        %v1802 = vadd.f32 %v1800, %v1801
        %v1803 = vrot.slane %v1802, 1
        %v1804 = vadd.f32 %v1802, %v1803
        %1805 = vmatprep.subr.mxu0 0.0
        %1806 = vmatpush1.msra.mxu0 %v1783
        %1807 = vmatprep.subr.mxu0 0.0
        %1808 = vmatpush1.msra.mxu0 %v1781
        %1809 = vmatprep.subr.mxu0 0.0
        %1810 = vmatpush1.msra.mxu0 %v1779
        %1811 = vmatprep.subr.mxu0 0.0
        %1812 = vmatpush1.msra.mxu0 %v1777
        %1813 = vmatprep.subr.mxu0 0.0
        %1814 = vmatpush1.msra.mxu0 %v1775
        %1815 = vmatprep.subr.mxu0 0.0
        %1816 = vmatpush1.msra.mxu0 %v1773
        %1817 = vmatprep.subr.mxu0 0.0
        %1818 = vmatpush1.msra.mxu0 %v1771
        %1819 = vmatprep.subr.mxu0 0.0
        %1820 = vmatpush1.msra.mxu0 %v1769
        %1821 = vmatprep.subr.mxu0 0.0
        %1822 = vmatpush1.msra.mxu0 %v1767
        %1823 = vmatprep.subr.mxu0 0.0
        %1824 = vmatpush1.msra.mxu0 %v1765
        %1825 = vmatprep.subr.mxu0 0.0
        %1826 = vmatpush1.msra.mxu0 %v1763
        %1827 = vmatprep.subr.mxu0 0.0
        %1828 = vmatpush1.msra.mxu0 %v1761
        %1829 = vmatprep.subr.mxu0 0.0
        %1830 = vmatpush1.msra.mxu0 %v1759
        %1831 = vmatprep.subr.mxu0 0.0
        %1832 = vmatpush1.msra.mxu0 %v1757
        %1833 = vmatprep.subr.mxu0 0.0
        %1834 = vmatpush1.msra.mxu0 %v1755
        %1835 = vmatprep.subr.mxu0 0.0
        %1836 = vmatpush1.msra.mxu0 %v1753
        %1837 = vmatprep.subr.mxu0 0.0
        %1838 = vmatpush2.msra.mxu0 0.0
        %1839 = vmatprep.subr.mxu0 0.0
        %1840 = vmatpush2.msra.mxu0 0.0
        %1841 = vmatprep.subr.mxu0 0.0
        %1842 = vmatpush2.msra.mxu0 0.0
        %1843 = vmatprep.subr.mxu0 0.0
        %1844 = vmatpush2.msra.mxu0 0.0
        %1845 = vmatprep.subr.mxu0 0.0
        %1846 = vmatpush2.msra.mxu0 0.0
        %1847 = vmatprep.subr.mxu0 0.0
        %1848 = vmatpush2.msra.mxu0 0.0
        %1849 = vmatprep.subr.mxu0 0.0
        %1850 = vmatpush2.msra.mxu0 0.0
        %1851 = vmatprep.subr.mxu0 0.0
        %1852 = vmatpush2.msra.mxu0 0.0
        %1853 = vmatprep.subr.mxu0 0.0
        %1854 = vmatpush2.msra.mxu0 0.0
        %1855 = vmatprep.subr.mxu0 0.0
        %1856 = vmatpush2.msra.mxu0 0.0
        %1857 = vmatprep.subr.mxu0 0.0
        %1858 = vmatpush2.msra.mxu0 0.0
        %1859 = vmatprep.subr.mxu0 0.0
        %1860 = vmatpush2.msra.mxu0 0.0
        %1861 = vmatprep.subr.mxu0 0.0
        %1862 = vmatpush2.msra.mxu0 0.0
        %1863 = vmatprep.subr.mxu0 0.0
        %1864 = vmatpush2.msra.mxu0 0.0
        %1865 = vmatprep.subr.mxu0 0.0
        %1866 = vmatpush2.msra.mxu0 0.0
        %1867 = vmatprep.subr.mxu0 0.0
        %1868 = vmatpush2.msra.mxu0 0.0
        %1869 = vmatprep.mubr.f32.mxu0 0.0
        %1870 = vmatmul.mubr.f32.gmra.mxu0 %v479
        %v1871 = vpop.f32.mrf.mxu0
        %v1872 = vadd.f32 0.0, %v1871
        %v1873 = vpop.f32.mrf.mxu0
        %1874 = vmatprep.mubr.f32.mxu0 0.0
        %1875 = vmatmul.mubr.f32.gmra.mxu0 %v484
        %v1876 = vpop.f32.mrf.mxu0
        %v1877 = vadd.f32 0.0, %v1876
        %v1878 = vpop.f32.mrf.mxu0
        %1879 = vmatprep.mubr.f32.mxu0 0.0
        %1880 = vmatmul.mubr.f32.gmra.mxu0 %v489
        %v1881 = vpop.f32.mrf.mxu0
        %v1882 = vadd.f32 0.0, %v1881
        %v1883 = vpop.f32.mrf.mxu0
        %1884 = vmatprep.mubr.f32.mxu0 0.0
        %1885 = vmatmul.mubr.f32.gmra.mxu0 %v494
        %v1886 = vpop.f32.mrf.mxu0
        %v1887 = vadd.f32 0.0, %v1886
        %v1888 = vpop.f32.mrf.mxu0
        %1889 = vdwg.mxu0
        %v1890 = vmul.f32 %v1804, 4.0
        %v1891 = vrcp.pop %v1890
        %v1892 = vmul.f32 %v1872, %v1891
        %v1893 = vmul.f32 %v1877, %v1891
        %v1894 = vmul.f32 %v1882, %v1891
        %v1895 = vmul.f32 %v1887, %v1891
        %v1896 = vadd.f32 %v1579, %v1892
        %v1897 = vadd.f32 %v1580, %v1893
        %v1898 = vadd.f32 %v1581, %v1894
        %v1899 = vadd.f32 %v1582, %v1895
        %v1900 = vld [vmem:[%s4] sm:$0xff]
        %v1901 = vld [vmem:[%s4 + $0x8] sm:$0xff]
        %v1902 = vld [vmem:[%s4 + $0x10] sm:$0xff]
        %v1903 = vld [vmem:[%s4 + $0x18] sm:$0xff]
        %1905 = vset.pattern.permute.xlu0 0
        %1906 = vperm.xlu0 %1905, %v1900
        %v1907 = vpop.permute.xlu0 %1906
        %1910 = vset.pattern.permute.xlu0 0
        %1911 = vperm.xlu0 %1910, %v1901
        %v1912 = vpop.permute.xlu0 %1911
        %1915 = vset.pattern.permute.xlu0 0
        %1916 = vperm.xlu0 %1915, %v1902
        %v1917 = vpop.permute.xlu0 %1916
        %1920 = vset.pattern.permute.xlu0 0
        %1921 = vperm.xlu0 %1920, %v1903
        %v1922 = vpop.permute.xlu0 %1921
        %v1924 = vadd.f32 %v1896, %v1907
        %v1925 = vadd.f32 %v1897, %v1912
        %v1926 = vadd.f32 %v1898, %v1917
        %v1927 = vadd.f32 %v1899, %v1922
        %1928 = vst [vmem:[%s282] sm:$0xff] %v1924
        %1929 = vst [vmem:[%s282 + $0x8] sm:$0xff] %v1925
        %1930 = vst [vmem:[%s282 + $0x10] sm:$0xff] %v1926
        %1931 = vst [vmem:[%s282 + $0x18] sm:$0xff] %v1927
        %s1932 = sand.u32 %s138, 1
        %s1933 = scalar_lea.sflag [#allocation5], %s1932
        %s1934 = sand.u32 %s138, 1
        %s1935 = smul.addr %s1934, 32
        %s1936 = scalar_lea.vmem [#allocation6], %s1935
        // Predicated region
        $region83: #{tpu_custom_call.1} parent=73 // pred_check
          %p1937 = pneg %p148
        $region84: #{tpu_custom_call.1} parent=73 // pred_check_branch
          %1939 = sbr.rel (%p1937) target = $region86
        $region85: #{tpu_custom_call.1} parent=73 // pred_region
          %s1941 = ssub.s32 512, 512
          %1942 = vsyncadd %s1933, %s1941
          %s1943 = smul.addr %s20, 128
          %s1944 = scalar_lea.hbm %s5, %s1943
          %s1945 = sshll.u32 %s1936, 4
          %s1946 = int_to_ptr.vmem [resolvable:$true] %s1945
          %1951 = dma.vmem_to_hbm [thread:$0]  %s1946, 512, %s1944, %s1933, 128, 256, 8
        $region86: #{tpu_custom_call.1} parent=73 // pred_fallthru
          _
      $region74: #{tpu_custom_call.1} parent=5 // pred_fallthru
        _
      %p1952 = scmp.le.s32.totalorder 2, %s15
      // Predicated region
      $region87: #{tpu_custom_call.1} parent=5 // pred_check
        %p1953 = pneg %p1952
      $region88: #{tpu_custom_call.1} parent=5 // pred_check_branch
        %1955 = sbr.rel (%p1953) target = $region90
      $region89: #{tpu_custom_call.1} parent=5 // pred_region
        %s1956 = ssub.s32 %s15, 2
        // Predicated region
        $region91: #{tpu_custom_call.1} parent=89 // pred_check
          %p1957 = pneg %p154
        $region92: #{tpu_custom_call.1} parent=89 // pred_check_branch
          %1959 = sbr.rel (%p1957) target = $region94
        $region93: #{tpu_custom_call.1} parent=89 // pred_region
          %s1960 = sand.u32 %s139, 1
          %s1961 = scalar_lea.sflag [#allocation5], %s1960
          %s1962 = sand.u32 %s139, 1
          %s1963 = smul.addr %s1962, 32
          %s1964 = scalar_lea.vmem [#allocation6], %s1963
          %1965 = dma.done %s1961, 512
        $region94: #{tpu_custom_call.1} parent=89 // pred_fallthru
          _
      $region90: #{tpu_custom_call.1} parent=5 // pred_fallthru
        _
    $region6: #{tpu_custom_call.1} parent=1 // loop_footer
      %s19 = sadd.s32 1, %s15
    $region7: #{tpu_custom_call.1} parent=1 // loop_footer_branch
      %14 = sbr.rel target = $region3
    $region8: #{tpu_custom_call.1} parent=1 // loop_exit
      _
    %1966 = vsyncpa [#allocation4], 1
    %s1967 = scalar_lea.sflag [#allocation4], 1
    %1968 = vsyncpa %s1967, 1
    %1969 = vsyncpa [#allocation5], 1
    %s1970 = scalar_lea.sflag [#allocation5], 1
    %1971 = vsyncpa %s1970, 1

</llo_original>
